<compile_context>
chip_gen: v7x
topology: tpu7x:2x2x1
jax: 0.10.0
libtpu: 0.0.40
codegen_flags: <defaults>
</compile_context>

<pallas_src>
import functools

import jax
import jax.numpy as jnp
from jax import lax
from jax.experimental import pallas as pl
from jax.experimental.pallas import tpu as pltpu

_BN_EPS = 1e-5


# --------------------------------- Pallas kernel --------------------------------
def _conv3_kernel(x_ref, w_ref, y_ref, s_ref, *, tile_h, img_w, cout, packed,
                  valid_h, needs_mask):
    """3x3 conv (padding=1) for one halo row tile + per-tile BN partial sums.

    x_ref : ((TH+2)*W, 3*Cin) bf16  width-tap expanded rows incl. 2-row halo
    w_ref : packed : (3*Cin, 128)   kh slabs at lane offsets {0, Cout, 2*Cout}
            else   : (3, 3*Cin, CP) per-kh weight slabs (Cout zero-padded)
    y_ref : (TH*W, CP) bf16         pre-BN conv output tile (lane dense)
    s_ref : (1, 2, CP) f32          row 0 = sum, row 1 = sum of squares
                                    (only rows < valid_h contribute)
    """
    rows = tile_h * img_w
    cp = y_ref.shape[-1]

    if packed:
        # One matmul over the whole haloed tile; the three kh results live in
        # disjoint lane ranges and are recombined with two lane rotations.
        big = jnp.dot(x_ref[...], w_ref[...], preferred_element_type=jnp.float32)
        acc = (big[0:rows, :]
               + pltpu.roll(big[img_w:img_w + rows, :], shift=cp - cout, axis=1)
               + pltpu.roll(big[2 * img_w:2 * img_w + rows, :],
                            shift=cp - 2 * cout, axis=1))
    else:
        # Fallback for 3*Cout > 128: three row-shifted matmuls.
        acc = (jnp.dot(x_ref[0:rows, :], w_ref[0],
                       preferred_element_type=jnp.float32)
               + jnp.dot(x_ref[img_w:img_w + rows, :], w_ref[1],
                         preferred_element_type=jnp.float32)
               + jnp.dot(x_ref[2 * img_w:2 * img_w + rows, :], w_ref[2],
                         preferred_element_type=jnp.float32))

    y_ref[...] = acc.astype(jnp.bfloat16)

    if needs_mask:
        # Last tile of each image may contain rows beyond the real height H;
        # exclude them from the batch statistics.
        i = pl.program_id(1)
        valid_rows = jnp.clip(valid_h - i * tile_h, 0, tile_h) * img_w
        ridx = lax.broadcasted_iota(jnp.int32, acc.shape, 0)
        msk = (ridx < valid_rows).astype(jnp.float32)
        s_sum = jnp.sum(acc * msk, axis=0, keepdims=True)
        s_sq = jnp.sum(acc * acc * msk, axis=0, keepdims=True)
    else:
        s_sum = jnp.sum(acc, axis=0, keepdims=True)
        s_sq = jnp.sum(acc * acc, axis=0, keepdims=True)

    r = lax.broadcasted_iota(jnp.int32, (2, cp), 0)
    s_ref[0] = jnp.where(r == 0,
                         jnp.broadcast_to(s_sum, (2, cp)),
                         jnp.broadcast_to(s_sq, (2, cp)))


# ---------------------------- generation-aware sizing ---------------------------
def _vmem_limit_bytes():
    try:
        cap = int(pltpu.get_tpu_info().vmem_capacity_bytes)
    except Exception:  # pragma: no cover - conservative fallback
        cap = 64 * 1024 * 1024
    # ~48 MiB on 64 MiB parts (v7x), ~96-100 MiB on 128 MiB parts (v5e/v6e).
    return min(cap * 3 // 4, 100 * 1024 * 1024)


def _pick_tile_h(H, W, k_in, cp, budget):
    """Largest tile height whose pipelined VMEM footprint fits the budget."""
    per_row = (2 * W * k_in * 2        # x halo tile, double-buffered, bf16
               + 2 * W * cp * 2        # y tile, double-buffered, bf16
               + 3 * W * cp * 4)       # in-kernel f32 intermediates (big/acc/tmp)
    fixed = (2 * 2 * W * k_in * 2      # halo rows of the x buffers
             + 2 * 3 * k_in * cp * 2   # weights
             + 8 * cp * 4 + (64 << 10))
    th = (budget - fixed) // per_row
    return int(max(1, min(H, th)))


# ------------------------------- conv + BN + ReLU -------------------------------
def _conv3x3_bn_relu(x_nhwc, w, gamma, beta):
    """3x3 conv (padding=1) + BatchNorm2d (training batch stats) + ReLU, NHWC."""
    N, H, W, Cin = x_nhwc.shape
    Cout = w.shape[-1]
    assert W % 8 == 0, "width must be a multiple of 8 (vreg sublane alignment)"
    CP = ((Cout + 127) // 128) * 128          # lane-dense output width
    packed = 3 * Cout <= 128
    K = 3 * Cin

    vmem_limit = _vmem_limit_bytes()
    TH = _pick_tile_h(H, W, K, CP, budget=vmem_limit // 2)
    nch = -(-H // TH)                          # ceil-div grid, no divisor cliff
    Hp = nch * TH
    rows = TH * W

    # Width-tap expansion (3x Cin) + overlapping (TH+2)-row halo tiles.
    # XLA fuses the pad/concat/slice/cast chain; materialized once in bf16.
    xp = jnp.pad(x_nhwc, ((0, 0), (1, 1 + Hp - H), (1, 1), (0, 0)))
    xw = jnp.concatenate([xp[:, :, kw:kw + W, :] for kw in range(3)], axis=-1)
    xt = jnp.stack([xw[:, i * TH:i * TH + TH + 2] for i in range(nch)], axis=1)
    xt = xt.reshape(N * nch * (TH + 2) * W, K).astype(jnp.bfloat16)

    # Weights: (kh, kw, ci, co) -> either a single lane-packed (K, 128) slab or
    # a (3, K, CP) per-kh stack, bf16.
    wk = w.reshape(3, K, Cout)
    if packed:
        wmat = jnp.zeros((K, CP), jnp.float32)
        for kh in range(3):
            wmat = wmat.at[:, kh * Cout:(kh + 1) * Cout].set(wk[kh])
        wmat = wmat.astype(jnp.bfloat16)
        w_spec = pl.BlockSpec((K, CP), lambda n, i: (0, 0))
    else:
        wmat = jnp.pad(wk, ((0, 0), (0, 0), (0, CP - Cout))).astype(jnp.bfloat16)
        w_spec = pl.BlockSpec((3, K, CP), lambda n, i: (0, 0, 0))

    kernel = functools.partial(_conv3_kernel, tile_h=TH, img_w=W, cout=Cout,
                               packed=packed, valid_h=H, needs_mask=(Hp != H))
    y_pre, stats = pl.pallas_call(
        kernel,
        out_shape=(jax.ShapeDtypeStruct((N * nch * rows, CP), jnp.bfloat16),
                   jax.ShapeDtypeStruct((N * nch, 2, CP), jnp.float32)),
        grid=(N, nch),
        in_specs=[
            pl.BlockSpec(((TH + 2) * W, K),
                         lambda n, i, nch=nch: (n * nch + i, 0)),
            w_spec,
        ],
        out_specs=(
            pl.BlockSpec((rows, CP), lambda n, i, nch=nch: (n * nch + i, 0)),
            pl.BlockSpec((1, 2, CP), lambda n, i, nch=nch: (n * nch + i, 0, 0)),
        ),
        compiler_params=pltpu.CompilerParams(
            dimension_semantics=("parallel", "parallel"),
            vmem_limit_bytes=vmem_limit),
    )(xt, wmat)

    # Combine BN statistics (training-mode batch stats, f32) and apply
    # scale/shift + ReLU in plain JAX on the real channels only -- XLA fuses
    # this with the next layer's expansion (no extra Pallas pass for Cout<<128).
    tot = jnp.sum(stats, axis=0)                    # (2, CP)
    cnt = float(N * H * W)
    mean = tot[0, :Cout] / cnt
    var = jnp.maximum(tot[1, :Cout] / cnt - mean * mean, 0.0)   # biased variance
    scale = gamma * lax.rsqrt(var + _BN_EPS)
    shift = beta - mean * scale
    y = y_pre.reshape(N, Hp, W, CP)[:, :H, :, :Cout].astype(jnp.float32)
    return jnp.maximum(y * scale + shift, 0.0)


# -------------------------------- plain-JAX glue --------------------------------
def _interp_matrix(n_in, n_out):
    """Interpolation matrix for bilinear upsample with align_corners=True."""
    if n_in == 1:
        return jnp.ones((n_out, 1), jnp.float32)
    src = jnp.arange(n_out, dtype=jnp.float32) * (n_in - 1) / (n_out - 1)
    i0 = jnp.clip(jnp.floor(src).astype(jnp.int32), 0, n_in - 2)
    frac = src - i0.astype(jnp.float32)
    cols = jnp.arange(n_in)
    m = ((cols[None, :] == i0[:, None]) * (1.0 - frac)[:, None]
         + (cols[None, :] == (i0 + 1)[:, None]) * frac[:, None])
    return m.astype(jnp.float32)


def _upsample_pad_concat(x1_nhwc, x2_nhwc):
    _, H1, W1, _ = x1_nhwc.shape
    My = _interp_matrix(H1, 2 * H1)
    Mx = _interp_matrix(W1, 2 * W1)
    x1u = jnp.einsum('oh,nhwc->nowc', My, x1_nhwc)
    x1u = jnp.einsum('pw,nowc->nopc', Mx, x1u)
    dy = x2_nhwc.shape[1] - x1u.shape[1]
    dx = x2_nhwc.shape[2] - x1u.shape[2]
    x1u = jnp.pad(x1u, ((0, 0), (dy // 2, dy - dy // 2),
                        (dx // 2, dx - dx // 2), (0, 0)))
    return jnp.concatenate([x2_nhwc, x1u], axis=-1)   # cat([x2, x1], dim=C)


def up_forward(params, x1, x2):
    """Forward of Up(in_channels, out_channels, bilinear=True); NCHW in/out."""
    x1 = jnp.transpose(x1, (0, 2, 3, 1))
    x2 = jnp.transpose(x2, (0, 2, 3, 1))
    x = _upsample_pad_concat(x1, x2)
    # DoubleConv(in, out, mid=in//2); conv bias cancelled by training-mode BN.
    y = _conv3x3_bn_relu(x, params["w1"], params["g1"], params["beta1"])
    y = _conv3x3_bn_relu(y, params["w2"], params["g2"], params["beta2"])
    return jnp.transpose(y, (0, 3, 1, 2))


# ------------------------- pure-JAX reference (f32 conv) ------------------------
def _conv_bn_relu_ref(x_nhwc, w, gamma, beta):
    y = lax.conv_general_dilated(x_nhwc, w, (1, 1), 'SAME',
                                 dimension_numbers=('NHWC', 'HWIO', 'NHWC'))
    mean = jnp.mean(y, axis=(0, 1, 2))
    var = jnp.mean((y - mean) ** 2, axis=(0, 1, 2))
    return jnp.maximum((y - mean) * lax.rsqrt(var + _BN_EPS) * gamma + beta, 0.0)


def up_forward_ref(params, x1, x2):
    x1 = jnp.transpose(x1, (0, 2, 3, 1))
    x2 = jnp.transpose(x2, (0, 2, 3, 1))
    x = _upsample_pad_concat(x1, x2)
    y = _conv_bn_relu_ref(x, params["w1"], params["g1"], params["beta1"])
    y = _conv_bn_relu_ref(y, params["w2"], params["g2"], params["beta2"])
    return jnp.transpose(y, (0, 3, 1, 2))


# ------------------------------ parameter creation ------------------------------
def init_up_params(key, in_channels, out_channels):
    mid = in_channels // 2
    k = jax.random.split(key, 8)
    return {
        # conv weights stored as (kh, kw, cin, cout)
        "w1": 0.05 * jax.random.normal(k[0], (3, 3, in_channels, mid), jnp.float32),
        "b1": 0.01 * jax.random.normal(k[1], (mid,), jnp.float32),   # no effect (train-mode BN)
        "g1": 1.0 + 0.1 * jax.random.normal(k[2], (mid,), jnp.float32),
        "beta1": 0.1 * jax.random.normal(k[3], (mid,), jnp.float32),
        "w2": 0.05 * jax.random.normal(k[4], (3, 3, mid, out_channels), jnp.float32),
        "b2": 0.01 * jax.random.normal(k[5], (out_channels,), jnp.float32),  # no effect
        "g2": 1.0 + 0.1 * jax.random.normal(k[6], (out_channels,), jnp.float32),
        "beta2": 0.1 * jax.random.normal(k[7], (out_channels,), jnp.float32),
    }


# --------------------------------------- main -----------------------------------
if __name__ == "__main__":
    in_channels = 16      # channels after concat([x2, upsample(x1)])
    out_channels = 8

    key = jax.random.PRNGKey(0)
    kp, kx1, kx2 = jax.random.split(key, 3)
    params = init_up_params(kp, in_channels, out_channels)

    # x1: low-res feature map, x2: skip connection (both NCHW)
    x1 = jax.random.normal(kx1, (2, in_channels // 2, 8, 8), jnp.float32)
    x2 = jax.random.normal(kx2, (2, in_channels // 2, 16, 16), jnp.float32)

    fwd = jax.jit(functools.partial(up_forward, params))
    out = fwd(x1, x2)
    jax.block_until_ready(out)

    assert out.shape == (2, out_channels, 16, 16), out.shape
    assert bool(jnp.all(jnp.isfinite(out)))

    # Structural correctness check vs. a float32 XLA reference (bf16 matmul
    # rounding gives small differences; structural bugs would be O(1)).
    ref = up_forward_ref(params, x1, x2)
    max_err = float(jnp.max(jnp.abs(out - ref)))
    assert max_err < 0.3, f"max abs error vs reference: {max_err}"

    print("KERNEL_OK")
</pallas_src>

<mosaic_0001>
module attributes {stable_mosaic.version = 11 : i64} {
  func.func @_conv3_kernel(%arg0: i32, %arg1: i32, %arg2: memref<288x48xbf16, #tpu.memory_space<vmem>>, %arg3: memref<48x128xbf16, #tpu.memory_space<vmem>>, %arg4: memref<256x128xbf16, #tpu.memory_space<vmem>>, %arg5: memref<1x2x128xf32, #tpu.memory_space<vmem>>) attributes {dimension_semantics = [#tpu.dimension_semantics<parallel>, #tpu.dimension_semantics<parallel>], iteration_bounds = array<i64: 2, 1>, scalar_prefetch = 0 : i64, scratch_operands = 0 : i64, tpu.core_type = #tpu.core_type<tc>, window_params = [{transform_indices = @transform_0, window_bounds = array<i64: 288, 48>}, {pipeline_mode = #tpu.pipeline_mode<synchronous>, transform_indices = @transform_1, window_bounds = array<i64: 48, 128>}, {transform_indices = @transform_2, window_bounds = array<i64: 256, 128>}, {transform_indices = @transform_3, window_bounds = array<i64: 1, 2, 128>}]} {
    %c0 = arith.constant 0 : index
    %c0_0 = arith.constant 0 : index
    %0 = vector.load %arg2[%c0, %c0_0] : memref<288x48xbf16, #tpu.memory_space<vmem>>, vector<288x48xbf16>
    %c0_1 = arith.constant 0 : index
    %c0_2 = arith.constant 0 : index
    %1 = vector.load %arg3[%c0_1, %c0_2] : memref<48x128xbf16, #tpu.memory_space<vmem>>, vector<48x128xbf16>
    %cst = arith.constant dense<0.000000e+00> : vector<288x128xf32>
    %2 = tpu.matmul %0, %1, %cst {dimension_numbers = #tpu.dot_dimension_numbers<[1], [0], [0], [1], [0, 0, 1, 1], [], []>} : vector<288x48xbf16>, vector<48x128xbf16>, vector<288x128xf32> -> vector<288x128xf32>
    %3 = vector.extract_strided_slice %2 {offsets = [0, 0], sizes = [256, 128], strides = [1, 1]} : vector<288x128xf32> to vector<256x128xf32>
    %4 = vector.extract_strided_slice %2 {offsets = [16, 0], sizes = [256, 128], strides = [1, 1]} : vector<288x128xf32> to vector<256x128xf32>
    %c120_i32 = arith.constant 120 : i32
    %5 = tpu.dynamic_rotate %4 by %c120_i32 dim 1 : vector<256x128xf32>, i32 -> vector<256x128xf32>
    %6 = arith.addf %3, %5 : vector<256x128xf32>
    %7 = vector.extract_strided_slice %2 {offsets = [32, 0], sizes = [256, 128], strides = [1, 1]} : vector<288x128xf32> to vector<256x128xf32>
    %c112_i32 = arith.constant 112 : i32
    %8 = tpu.dynamic_rotate %7 by %c112_i32 dim 1 : vector<256x128xf32>, i32 -> vector<256x128xf32>
    %9 = arith.addf %6, %8 : vector<256x128xf32>
    %10 = arith.truncf %9 : vector<256x128xf32> to vector<256x128xbf16>
    %c0_3 = arith.constant 0 : index
    %c0_4 = arith.constant 0 : index
    %11 = vector.load %arg4[%c0_3, %c0_4] : memref<256x128xbf16, #tpu.memory_space<vmem>>, vector<256x128xbf16>
    tpu.vector_store %arg4[%c0_3, %c0_4], %10 {strides = array<i32>} : memref<256x128xbf16, #tpu.memory_space<vmem>>, vector<256x128xbf16>,
    %cst_5 = arith.constant dense<0.000000e+00> : vector<128xf32>
    %12 = vector.multi_reduction <add>, %9, %cst_5 [0] : vector<256x128xf32> to vector<128xf32>
    %13 = vector.shape_cast %12 : vector<128xf32> to vector<1x128xf32>
    %14 = arith.mulf %9, %9 : vector<256x128xf32>
    %cst_6 = arith.constant dense<0.000000e+00> : vector<128xf32>
    %15 = vector.multi_reduction <add>, %14, %cst_6 [0] : vector<256x128xf32> to vector<128xf32>
    %16 = vector.shape_cast %15 : vector<128xf32> to vector<1x128xf32>
    %17 = tpu.iota {dimensions = array<i32: 0>} : vector<2x128xi32>
    %c0_i32 = arith.constant 0 : i32
    %18 = vector.broadcast %c0_i32 : i32 to vector<2x128xi32>
    %19 = arith.cmpi eq, %17, %18 : vector<2x128xi32>
    %20 = vector.shape_cast %13 : vector<1x128xf32> to vector<1x128xf32>
    %21 = vector.broadcast %20 : vector<1x128xf32> to vector<2x128xf32>
    %22 = vector.shape_cast %16 : vector<1x128xf32> to vector<1x128xf32>
    %23 = vector.broadcast %22 : vector<1x128xf32> to vector<2x128xf32>
    %24 = arith.select %19, %21, %23 : vector<2x128xi1>, vector<2x128xf32>
    %c0_7 = arith.constant 0 : index
    %c0_8 = arith.constant 0 : index
    %c0_9 = arith.constant 0 : index
    %25 = vector.load %arg5[%c0_7, %c0_8, %c0_9] : memref<1x2x128xf32, #tpu.memory_space<vmem>>, vector<1x2x128xf32>
    %26 = vector.shape_cast %25 : vector<1x2x128xf32> to vector<2x128xf32>
    %27 = vector.shape_cast %24 : vector<2x128xf32> to vector<1x2x128xf32>
    tpu.vector_store %arg5[%c0_7, %c0_8, %c0_9], %27 {strides = array<i32>} : memref<1x2x128xf32, #tpu.memory_space<vmem>>, vector<1x2x128xf32>,
    return
  }
  func.func @transform_0(%arg0: i32, %arg1: i32) -> (i32, i32) {
    %c1_i32 = arith.constant 1 : i32
    %0 = arith.muli %arg0, %c1_i32 : i32
    %1 = arith.addi %0, %arg1 : i32
    %c0_i32 = arith.constant 0 : i32
    %c0_i32_0 = arith.constant 0 : i32
    return %1, %c0_i32 : i32, i32
  }
  func.func @transform_1(%arg0: i32, %arg1: i32) -> (i32, i32) {
    %c0_i32 = arith.constant 0 : i32
    %c0_i32_0 = arith.constant 0 : i32
    %c0_i32_1 = arith.constant 0 : i32
    return %c0_i32, %c0_i32_0 : i32, i32
  }
  func.func @transform_2(%arg0: i32, %arg1: i32) -> (i32, i32) {
    %c1_i32 = arith.constant 1 : i32
    %0 = arith.muli %arg0, %c1_i32 : i32
    %1 = arith.addi %0, %arg1 : i32
    %c0_i32 = arith.constant 0 : i32
    %c0_i32_0 = arith.constant 0 : i32
    return %1, %c0_i32 : i32, i32
  }
  func.func @transform_3(%arg0: i32, %arg1: i32) -> (i32, i32, i32) {
    %c1_i32 = arith.constant 1 : i32
    %0 = arith.muli %arg0, %c1_i32 : i32
    %1 = arith.addi %0, %arg1 : i32
    %c0_i32 = arith.constant 0 : i32
    %c0_i32_0 = arith.constant 0 : i32
    %c0_i32_1 = arith.constant 0 : i32
    return %1, %c0_i32, %c0_i32_0 : i32, i32, i32
  }
}

module attributes {stable_mosaic.version = 11 : i64} {
  func.func @_conv3_kernel(%arg0: i32, %arg1: i32, %arg2: memref<288x24xbf16, #tpu.memory_space<vmem>>, %arg3: memref<24x128xbf16, #tpu.memory_space<vmem>>, %arg4: memref<256x128xbf16, #tpu.memory_space<vmem>>, %arg5: memref<1x2x128xf32, #tpu.memory_space<vmem>>) attributes {dimension_semantics = [#tpu.dimension_semantics<parallel>, #tpu.dimension_semantics<parallel>], iteration_bounds = array<i64: 2, 1>, scalar_prefetch = 0 : i64, scratch_operands = 0 : i64, tpu.core_type = #tpu.core_type<tc>, window_params = [{transform_indices = @transform_0, window_bounds = array<i64: 288, 24>}, {pipeline_mode = #tpu.pipeline_mode<synchronous>, transform_indices = @transform_1, window_bounds = array<i64: 24, 128>}, {transform_indices = @transform_2, window_bounds = array<i64: 256, 128>}, {transform_indices = @transform_3, window_bounds = array<i64: 1, 2, 128>}]} {
    %c0 = arith.constant 0 : index
    %c0_0 = arith.constant 0 : index
    %0 = vector.load %arg2[%c0, %c0_0] : memref<288x24xbf16, #tpu.memory_space<vmem>>, vector<288x24xbf16>
    %c0_1 = arith.constant 0 : index
    %c0_2 = arith.constant 0 : index
    %1 = vector.load %arg3[%c0_1, %c0_2] : memref<24x128xbf16, #tpu.memory_space<vmem>>, vector<24x128xbf16>
    %cst = arith.constant dense<0.000000e+00> : vector<288x128xf32>
    %2 = tpu.matmul %0, %1, %cst {dimension_numbers = #tpu.dot_dimension_numbers<[1], [0], [0], [1], [0, 0, 1, 1], [], []>} : vector<288x24xbf16>, vector<24x128xbf16>, vector<288x128xf32> -> vector<288x128xf32>
    %3 = vector.extract_strided_slice %2 {offsets = [0, 0], sizes = [256, 128], strides = [1, 1]} : vector<288x128xf32> to vector<256x128xf32>
    %4 = vector.extract_strided_slice %2 {offsets = [16, 0], sizes = [256, 128], strides = [1, 1]} : vector<288x128xf32> to vector<256x128xf32>
    %c120_i32 = arith.constant 120 : i32
    %5 = tpu.dynamic_rotate %4 by %c120_i32 dim 1 : vector<256x128xf32>, i32 -> vector<256x128xf32>
    %6 = arith.addf %3, %5 : vector<256x128xf32>
    %7 = vector.extract_strided_slice %2 {offsets = [32, 0], sizes = [256, 128], strides = [1, 1]} : vector<288x128xf32> to vector<256x128xf32>
    %c112_i32 = arith.constant 112 : i32
    %8 = tpu.dynamic_rotate %7 by %c112_i32 dim 1 : vector<256x128xf32>, i32 -> vector<256x128xf32>
    %9 = arith.addf %6, %8 : vector<256x128xf32>
    %10 = arith.truncf %9 : vector<256x128xf32> to vector<256x128xbf16>
    %c0_3 = arith.constant 0 : index
    %c0_4 = arith.constant 0 : index
    %11 = vector.load %arg4[%c0_3, %c0_4] : memref<256x128xbf16, #tpu.memory_space<vmem>>, vector<256x128xbf16>
    tpu.vector_store %arg4[%c0_3, %c0_4], %10 {strides = array<i32>} : memref<256x128xbf16, #tpu.memory_space<vmem>>, vector<256x128xbf16>,
    %cst_5 = arith.constant dense<0.000000e+00> : vector<128xf32>
    %12 = vector.multi_reduction <add>, %9, %cst_5 [0] : vector<256x128xf32> to vector<128xf32>
    %13 = vector.shape_cast %12 : vector<128xf32> to vector<1x128xf32>
    %14 = arith.mulf %9, %9 : vector<256x128xf32>
    %cst_6 = arith.constant dense<0.000000e+00> : vector<128xf32>
    %15 = vector.multi_reduction <add>, %14, %cst_6 [0] : vector<256x128xf32> to vector<128xf32>
    %16 = vector.shape_cast %15 : vector<128xf32> to vector<1x128xf32>
    %17 = tpu.iota {dimensions = array<i32: 0>} : vector<2x128xi32>
    %c0_i32 = arith.constant 0 : i32
    %18 = vector.broadcast %c0_i32 : i32 to vector<2x128xi32>
    %19 = arith.cmpi eq, %17, %18 : vector<2x128xi32>
    %20 = vector.shape_cast %13 : vector<1x128xf32> to vector<1x128xf32>
    %21 = vector.broadcast %20 : vector<1x128xf32> to vector<2x128xf32>
    %22 = vector.shape_cast %16 : vector<1x128xf32> to vector<1x128xf32>
    %23 = vector.broadcast %22 : vector<1x128xf32> to vector<2x128xf32>
    %24 = arith.select %19, %21, %23 : vector<2x128xi1>, vector<2x128xf32>
    %c0_7 = arith.constant 0 : index
    %c0_8 = arith.constant 0 : index
    %c0_9 = arith.constant 0 : index
    %25 = vector.load %arg5[%c0_7, %c0_8, %c0_9] : memref<1x2x128xf32, #tpu.memory_space<vmem>>, vector<1x2x128xf32>
    %26 = vector.shape_cast %25 : vector<1x2x128xf32> to vector<2x128xf32>
    %27 = vector.shape_cast %24 : vector<2x128xf32> to vector<1x2x128xf32>
    tpu.vector_store %arg5[%c0_7, %c0_8, %c0_9], %27 {strides = array<i32>} : memref<1x2x128xf32, #tpu.memory_space<vmem>>, vector<1x2x128xf32>,
    return
  }
  func.func @transform_0(%arg0: i32, %arg1: i32) -> (i32, i32) {
    %c1_i32 = arith.constant 1 : i32
    %0 = arith.muli %arg0, %c1_i32 : i32
    %1 = arith.addi %0, %arg1 : i32
    %c0_i32 = arith.constant 0 : i32
    %c0_i32_0 = arith.constant 0 : i32
    return %1, %c0_i32 : i32, i32
  }
  func.func @transform_1(%arg0: i32, %arg1: i32) -> (i32, i32) {
    %c0_i32 = arith.constant 0 : i32
    %c0_i32_0 = arith.constant 0 : i32
    %c0_i32_1 = arith.constant 0 : i32
    return %c0_i32, %c0_i32_0 : i32, i32
  }
  func.func @transform_2(%arg0: i32, %arg1: i32) -> (i32, i32) {
    %c1_i32 = arith.constant 1 : i32
    %0 = arith.muli %arg0, %c1_i32 : i32
    %1 = arith.addi %0, %arg1 : i32
    %c0_i32 = arith.constant 0 : i32
    %c0_i32_0 = arith.constant 0 : i32
    return %1, %c0_i32 : i32, i32
  }
  func.func @transform_3(%arg0: i32, %arg1: i32) -> (i32, i32, i32) {
    %c1_i32 = arith.constant 1 : i32
    %0 = arith.muli %arg0, %c1_i32 : i32
    %1 = arith.addi %0, %arg1 : i32
    %c0_i32 = arith.constant 0 : i32
    %c0_i32_0 = arith.constant 0 : i32
    %c0_i32_1 = arith.constant 0 : i32
    return %1, %c0_i32, %c0_i32_0 : i32, i32, i32
  }
}

</mosaic_0001>

<llo_original>
// kernel: up_forward.2
$region0: #{up_forward.2}
  #allocation0 [shape = 'u32[]', space=smem, size = 0x4, offset = 0x4, fixed_abs, tag = 'smem constant byte address 0x4 - core index']
  #allocation1 [shape = 'u32[144,128]{1,0:T(1,128)}', space=vmem, size = 0x12000, scoped, tag = 'internal scratch']
  %s0 = inlined_call_operand.vmem [shape: bf16[576,48], index: 0, kind: input, shape index: {}]
  %s1 = inlined_call_operand.vmem [shape: bf16[48,128], index: 1, kind: input, shape index: {}]
  %s2 = inlined_call_operand.vmem [shape: bf16[512,128], index: 2, kind: output, shape index: {0}]
  %s3 = inlined_call_operand.vmem [shape: f32[2,2,128], index: 3, kind: output, shape index: {1}]
  %4 = xla_tuple %s2, %s3
  %s5 = sld [smem:[#allocation0]]
  $region49: #{up_forward.2} parent=0
    _
  %s7 = ssub.s32 1, %s5
  %s8 = scalar_select 0, %s7, %s5
  loop: start=0, step=1, limit=4
  $region2: #{up_forward.2} parent=0 // loop_pre_header
    _
  $region3: #{up_forward.2} parent=0 // loop_header
    %s10 = sphi 0, %s14
    %p11 = scmp.ge.s32.totalorder %s10, 4
    %s17 = sphi 0, %s29
    %s18 = sphi 0, %s25
    %s19 = sphi 0, %s17
    %s20 = sphi 0, %s18
    %s21 = sphi 0, %s19
    %s22 = sphi 0, %s20
    %s34 = sphi 0, %s36
    %s37 = sphi 0, %s34
    %s38 = sphi 0, %s37
    %s54 = sphi 0, %s38
    %s58 = sphi 0, %s58
    %s60 = sphi 0, %s58
    %s61 = sphi 0, %s60
    %s75 = sphi 0, %s61
    %s83 = sphi 0, %s85
    %s86 = sphi 0, %s83
    %s87 = sphi 0, %s86
    %s103 = sphi 0, %s87
    %s111 = sphi 0, %s113
    %s114 = sphi 0, %s111
    %s115 = sphi 0, %s114
    %s131 = sphi 0, %s115
  $region4: #{up_forward.2} parent=0 // loop_header_branch
    %13 = sbr.rel (%p11) target = $region8
  $region5: #{up_forward.2} parent=0 // loop_body
    %s15 = ssub.s32 %s10, 1
    %s16 = ssub.s32 %s10, 2
    %s23 = sadd.s32 1, %s18
    %p24 = scmp.ge.s32.totalorder %s23, 1
    %s25 = scalar_select %p24, 0, %s23
    %s26 = sadd.s32 1, %s17
    %s27 = scalar_select %p24, %s26, %s17
    %p28 = scmp.ge.s32.totalorder %s27, 2
    %s29 = scalar_select %p28, 0, %s27
    %s30 = sadd.s32 %s17, %s18
    %s31 = sadd.s32 %s29, %s25
    %s32 = ssub.s32 %s30, %s31
    %p33 = scmp.eq.s32.totalorder %s32, 0
    %s35 = sadd.s32 %s34, 1
    %s36 = scalar_select %p33, %s34, %s35
    %p39 = pneg %p33
    %p40 = scmp.eq.s32.totalorder %s10, 1
    %p41 = por %p39, %p40
    %p42 = scmp.ne.s32.totalorder %s34, %s37
    %p43 = scmp.eq.s32.totalorder %s10, 0
    %p44 = por %p42, %p43
    %p45 = scmp.ne.s32.totalorder %s34, %s37
    %p46 = scmp.eq.s32.totalorder %s15, 1
    %p47 = por %p45, %p46
    %p48 = scmp.ne.s32.totalorder %s37, %s38
    %p49 = scmp.eq.s32.totalorder %s15, 0
    %p50 = por %p48, %p49
    %p51 = scmp.ne.s32.totalorder %s37, %s38
    %p52 = scmp.eq.s32.totalorder %s16, 1
    %p53 = por %p51, %p52
    %p55 = scmp.ne.s32.totalorder %s38, %s54
    %p56 = scmp.eq.s32.totalorder %s16, 0
    %p57 = por %p55, %p56
    %s59 = sadd.s32 %s58, 1
    %p62 = scmp.eq.s32.totalorder %s10, 1
    %p63 = scmp.ne.s32.totalorder %s58, %s60
    %p64 = scmp.eq.s32.totalorder %s10, 0
    %p65 = por %p63, %p64
    %p66 = scmp.ne.s32.totalorder %s58, %s60
    %p67 = scmp.eq.s32.totalorder %s15, 1
    %p68 = por %p66, %p67
    %p69 = scmp.ne.s32.totalorder %s60, %s61
    %p70 = scmp.eq.s32.totalorder %s15, 0
    %p71 = por %p69, %p70
    %p72 = scmp.ne.s32.totalorder %s60, %s61
    %p73 = scmp.eq.s32.totalorder %s16, 1
    %p74 = por %p72, %p73
    %p76 = scmp.ne.s32.totalorder %s61, %s75
    %p77 = scmp.eq.s32.totalorder %s16, 0
    %p78 = por %p76, %p77
    %s79 = sadd.s32 %s17, %s18
    %s80 = sadd.s32 %s29, %s25
    %s81 = ssub.s32 %s79, %s80
    %p82 = scmp.eq.s32.totalorder %s81, 0
    %s84 = sadd.s32 %s83, 1
    %s85 = scalar_select %p82, %s83, %s84
    %p88 = pneg %p82
    %p89 = scmp.eq.s32.totalorder %s10, 1
    %p90 = por %p88, %p89
    %p91 = scmp.ne.s32.totalorder %s83, %s86
    %p92 = scmp.eq.s32.totalorder %s10, 0
    %p93 = por %p91, %p92
    %p94 = scmp.ne.s32.totalorder %s83, %s86
    %p95 = scmp.eq.s32.totalorder %s15, 1
    %p96 = por %p94, %p95
    %p97 = scmp.ne.s32.totalorder %s86, %s87
    %p98 = scmp.eq.s32.totalorder %s15, 0
    %p99 = por %p97, %p98
    %p100 = scmp.ne.s32.totalorder %s86, %s87
    %p101 = scmp.eq.s32.totalorder %s16, 1
    %p102 = por %p100, %p101
    %p104 = scmp.ne.s32.totalorder %s87, %s103
    %p105 = scmp.eq.s32.totalorder %s16, 0
    %p106 = por %p104, %p105
    %s107 = sadd.s32 %s17, %s18
    %s108 = sadd.s32 %s29, %s25
    %s109 = ssub.s32 %s107, %s108
    %p110 = scmp.eq.s32.totalorder %s109, 0
    %s112 = sadd.s32 %s111, 1
    %s113 = scalar_select %p110, %s111, %s112
    %p116 = pneg %p110
    %p117 = scmp.eq.s32.totalorder %s10, 1
    %p118 = por %p116, %p117
    %p119 = scmp.ne.s32.totalorder %s111, %s114
    %p120 = scmp.eq.s32.totalorder %s10, 0
    %p121 = por %p119, %p120
    %p122 = scmp.ne.s32.totalorder %s111, %s114
    %p123 = scmp.eq.s32.totalorder %s15, 1
    %p124 = por %p122, %p123
    %p125 = scmp.ne.s32.totalorder %s114, %s115
    %p126 = scmp.eq.s32.totalorder %s15, 0
    %p127 = por %p125, %p126
    %p128 = scmp.ne.s32.totalorder %s114, %s115
    %p129 = scmp.eq.s32.totalorder %s16, 1
    %p130 = por %p128, %p129
    %p132 = scmp.ne.s32.totalorder %s115, %s131
    %p133 = scmp.eq.s32.totalorder %s16, 0
    %p134 = por %p132, %p133
    %p135 = scmp.le.s32.totalorder 1, %s10
    %p136 = scmp.lt.s32.totalorder %s10, 3
    %p137 = pnand %p135, %p136
    %p138 = pneg %p137
    // Predicated region
    $region9: #{up_forward.2} parent=5 // pred_check
      _
    $region10: #{up_forward.2} parent=5 // pred_check_branch
      %140 = sbr.rel (%p137) target = $region12
    $region11: #{up_forward.2} parent=5 // pred_region
      %s141 = ssub.s32 %s10, 1
      // Predicated region
      $region13: #{up_forward.2} parent=11 // pred_check
        %p142 = pneg %p71
      $region14: #{up_forward.2} parent=11 // pred_check_branch
        %144 = sbr.rel (%p142) target = $region16
      $region15: #{up_forward.2} parent=11 // pred_region
        _
      $region16: #{up_forward.2} parent=11 // pred_fallthru
        _
    $region12: #{up_forward.2} parent=5 // pred_fallthru
      _
    %p145 = scmp.lt.s32.totalorder %s10, 2
    // Predicated region
    $region17: #{up_forward.2} parent=5 // pred_check
      %p146 = pneg %p145
    $region18: #{up_forward.2} parent=5 // pred_check_branch
      %148 = sbr.rel (%p146) target = $region20
    $region19: #{up_forward.2} parent=5 // pred_region
      // Predicated region
      $region21: #{up_forward.2} parent=19 // pred_check
        %p149 = pneg %p44
      $region22: #{up_forward.2} parent=19 // pred_check_branch
        %151 = sbr.rel (%p149) target = $region24
      $region23: #{up_forward.2} parent=19 // pred_region
        %s152 = sadd.s32 %s17, %s18
        %s153 = smul.u32 36, %s152
        %p154 = scmp.lt.s32.totalorder %s153, 71
        %s155 = scalar_select %p154, %s153, 71
        %s156 = smul.addr %s155, 4
        %s157 = scalar_lea.vmem %s0, %s156
        %s158 = sadd.s32 %s17, %s18
        %s159 = smul.u32 36, %s158
      $region24: #{up_forward.2} parent=19 // pred_fallthru
        _
    $region20: #{up_forward.2} parent=5 // pred_fallthru
      _
    %p160 = scmp.le.s32.totalorder 1, %s10
    %p161 = scmp.lt.s32.totalorder %s10, 3
    %p162 = pnand %p160, %p161
    %p163 = pneg %p162
    // Predicated region
    $region25: #{up_forward.2} parent=5 // pred_check
      _
    $region26: #{up_forward.2} parent=5 // pred_check_branch
      %165 = sbr.rel (%p162) target = $region28
    $region27: #{up_forward.2} parent=5 // pred_region
      %s166 = ssub.s32 %s10, 1
      %s167 = sadd.s32 %s19, %s20
      %s168 = smul.u32 36, %s167
      %p169 = scmp.lt.s32.totalorder %s168, 71
      %s170 = scalar_select %p169, %s168, 71
      %s171 = smul.addr %s170, 4
      %s172 = scalar_lea.vmem %s0, %s171
      %p173 = pneg %p50
      %p174 = pneg %p47
      %p175 = pneg %p71
      %p176 = pneg %p68
      %p177 = pneg %p99
      %p178 = pneg %p96
      %s179 = sadd.s32 %s19, %s20
      %s180 = smul.u32 32, %s179
      %p181 = scmp.lt.s32.totalorder %s180, 63
      %s182 = scalar_select %p181, %s180, 63
      %s183 = smul.addr %s182, 4
      %s184 = scalar_lea.vmem %s2, %s183
      %p185 = pneg %p127
      %p186 = pneg %p124
      %s187 = sadd.s32 %s19, %s20
      %p188 = scmp.lt.s32.totalorder %s187, 1
      %s189 = scalar_select %p188, %s187, 1
      %s190 = smul.addr %s189, 2
      %s191 = scalar_lea.vmem %s3, %s190
      %s192 = sadd.s32 %s19, %s20
      %s193 = smul.u32 36, %s192
      %p194 = scmp.lt.s32.totalorder %s193, 71
      %s195 = scalar_select %p194, %s193, 71
      %s196 = smul.addr %s195, 4
      %s197 = scalar_lea.vmem %s0, %s196
      %s198 = sadd.s32 %s19, %s20
      %s199 = smul.u32 36, %s198
      %s200 = sadd.s32 %s19, %s20
      %s201 = smul.u32 32, %s200
      %p202 = scmp.lt.s32.totalorder %s201, 63
      %s203 = scalar_select %p202, %s201, 63
      %s204 = smul.addr %s203, 4
      %s205 = scalar_lea.vmem %s2, %s204
      %s206 = sadd.s32 %s19, %s20
      %s207 = smul.u32 32, %s206
      %s208 = sadd.s32 %s19, %s20
      %p209 = scmp.lt.s32.totalorder %s208, 1
      %s210 = scalar_select %p209, %s208, 1
      %s211 = smul.addr %s210, 2
      %s212 = scalar_lea.vmem %s3, %s211
      %s213 = sadd.s32 %s19, %s20
      %v215 = vld [vmem:[%s197] sm:$0xf]
      %v216 = vld [vmem:[%s197 + $0x4] sm:$0xf]
      %v217 = vld [vmem:[%s197 + $0x8] sm:$0xf]
      %v218 = vld [vmem:[%s197 + $0xc] sm:$0xf]
      %v219 = vld [vmem:[%s197 + $0x10] sm:$0xf]
      %v220 = vld [vmem:[%s197 + $0x14] sm:$0xf]
      %v221 = vld [vmem:[%s197 + $0x18] sm:$0xf]
      %v222 = vld [vmem:[%s197 + $0x1c] sm:$0xf]
      %v223 = vld [vmem:[%s197 + $0x20] sm:$0xf]
      %v224 = vld [vmem:[%s197 + $0x24] sm:$0xf]
      %v225 = vld [vmem:[%s197 + $0x28] sm:$0xf]
      %v226 = vld [vmem:[%s197 + $0x2c] sm:$0xf]
      %v227 = vld [vmem:[%s197 + $0x30] sm:$0xf]
      %v228 = vld [vmem:[%s197 + $0x34] sm:$0xf]
      %v229 = vld [vmem:[%s197 + $0x38] sm:$0xf]
      %v230 = vld [vmem:[%s197 + $0x3c] sm:$0xf]
      %v231 = vld [vmem:[%s197 + $0x40] sm:$0xf]
      %v232 = vld [vmem:[%s197 + $0x44] sm:$0xf]
      %v233 = vld [vmem:[%s197 + $0x48] sm:$0xf]
      %v234 = vld [vmem:[%s197 + $0x4c] sm:$0xf]
      %v235 = vld [vmem:[%s197 + $0x50] sm:$0xf]
      %v236 = vld [vmem:[%s197 + $0x54] sm:$0xf]
      %v237 = vld [vmem:[%s197 + $0x58] sm:$0xf]
      %v238 = vld [vmem:[%s197 + $0x5c] sm:$0xf]
      %v239 = vld [vmem:[%s197 + $0x60] sm:$0xf]
      %v240 = vld [vmem:[%s197 + $0x64] sm:$0xf]
      %v241 = vld [vmem:[%s197 + $0x68] sm:$0xf]
      %v242 = vld [vmem:[%s197 + $0x6c] sm:$0xf]
      %v243 = vld [vmem:[%s197 + $0x70] sm:$0xf]
      %v244 = vld [vmem:[%s197 + $0x74] sm:$0xf]
      %v245 = vld [vmem:[%s197 + $0x78] sm:$0xf]
      %v246 = vld [vmem:[%s197 + $0x7c] sm:$0xf]
      %v247 = vld [vmem:[%s197 + $0x80] sm:$0xf]
      %v248 = vld [vmem:[%s197 + $0x84] sm:$0xf]
      %v249 = vld [vmem:[%s197 + $0x88] sm:$0xf]
      %v250 = vld [vmem:[%s197 + $0x8c] sm:$0xf]
      %v251 = vld [vmem:[%s1] sm:$0xf]
      %v252 = vld [vmem:[%s1 + $0x4] sm:$0xf]
      %v253 = vld [vmem:[%s1 + $0x8] sm:$0xf]
      %v254 = vld [vmem:[%s1 + $0xc] sm:$0xf]
      %v255 = vld [vmem:[%s1 + $0x10] sm:$0xf]
      %v256 = vld [vmem:[%s1 + $0x14] sm:$0xf]
      %v293 = vunpack.c.l.b16 %v215
      %v294 = vunpack.c.l.b16 %v216
      %v295 = vunpack.c.l.b16 %v217
      %v296 = vunpack.c.l.b16 %v218
      %v297 = vunpack.c.l.b16 %v219
      %v298 = vunpack.c.l.b16 %v220
      %v299 = vunpack.c.l.b16 %v221
      %v300 = vunpack.c.l.b16 %v222
      %v301 = vunpack.c.l.b16 %v223
      %v302 = vunpack.c.l.b16 %v224
      %v303 = vunpack.c.l.b16 %v225
      %v304 = vunpack.c.l.b16 %v226
      %v305 = vunpack.c.l.b16 %v227
      %v306 = vunpack.c.l.b16 %v228
      %v307 = vunpack.c.l.b16 %v229
      %v308 = vunpack.c.l.b16 %v230
      %v309 = vunpack.c.l.b16 %v231
      %v310 = vunpack.c.l.b16 %v232
      %v311 = vunpack.c.l.b16 %v233
      %v312 = vunpack.c.l.b16 %v234
      %v313 = vunpack.c.l.b16 %v235
      %v314 = vunpack.c.l.b16 %v236
      %v315 = vunpack.c.l.b16 %v237
      %v316 = vunpack.c.l.b16 %v238
      %v317 = vunpack.c.l.b16 %v239
      %v318 = vunpack.c.l.b16 %v240
      %v319 = vunpack.c.l.b16 %v241
      %v320 = vunpack.c.l.b16 %v242
      %v321 = vunpack.c.l.b16 %v243
      %v322 = vunpack.c.l.b16 %v244
      %v323 = vunpack.c.l.b16 %v245
      %v324 = vunpack.c.l.b16 %v246
      %v325 = vunpack.c.l.b16 %v247
      %v326 = vunpack.c.l.b16 %v248
      %v327 = vunpack.c.l.b16 %v249
      %v328 = vunpack.c.l.b16 %v250
      %v329 = vpack.c.b16 %v294, %v293
      %v330 = vpack.c.b16 %v296, %v295
      %v331 = vpack.c.b16 %v298, %v297
      %v332 = vpack.c.b16 %v300, %v299
      %v333 = vpack.c.b16 %v302, %v301
      %v334 = vpack.c.b16 %v304, %v303
      %v335 = vpack.c.b16 %v306, %v305
      %v336 = vpack.c.b16 %v308, %v307
      %v337 = vpack.c.b16 %v310, %v309
      %v338 = vpack.c.b16 %v312, %v311
      %v339 = vpack.c.b16 %v314, %v313
      %v340 = vpack.c.b16 %v316, %v315
      %v341 = vpack.c.b16 %v318, %v317
      %v342 = vpack.c.b16 %v320, %v319
      %v343 = vpack.c.b16 %v322, %v321
      %v344 = vpack.c.b16 %v324, %v323
      %v345 = vpack.c.b16 %v326, %v325
      %v346 = vpack.c.b16 %v328, %v327
      %v353 = vunpack.c.l.b16 %v251
      %v354 = vunpack.c.l.b16 %v252
      %v355 = vunpack.c.l.b16 %v253
      %v356 = vunpack.c.l.b16 %v254
      %v357 = vunpack.c.l.b16 %v255
      %v358 = vunpack.c.l.b16 %v256
      %v359 = vpack.c.b16 %v354, %v353
      %v360 = vpack.c.b16 %v356, %v355
      %v361 = vpack.c.b16 %v358, %v357
      %vm365 = vcmask 392192
      %v367 = vsel %vm365, %v329, 0
      %v370 = vsel %vm365, %v330, 0
      %v373 = vsel %vm365, %v331, 0
      %v376 = vsel %vm365, %v332, 0
      %v379 = vsel %vm365, %v333, 0
      %v382 = vsel %vm365, %v334, 0
      %v385 = vsel %vm365, %v335, 0
      %v388 = vsel %vm365, %v336, 0
      %v391 = vsel %vm365, %v337, 0
      %v394 = vsel %vm365, %v338, 0
      %v397 = vsel %vm365, %v339, 0
      %v400 = vsel %vm365, %v340, 0
      %v403 = vsel %vm365, %v341, 0
      %v406 = vsel %vm365, %v342, 0
      %v409 = vsel %vm365, %v343, 0
      %v412 = vsel %vm365, %v344, 0
      %v415 = vsel %vm365, %v345, 0
      %v418 = vsel %vm365, %v346, 0
      %420 = vmatprep.subr.bf16.mxu0 0
      %421 = vmatpush1.bf16.msra.mxu0 %v359
      %422 = vmatprep.subr.bf16.mxu0 0
      %423 = vmatpush1.bf16.msra.mxu0 %v360
      %424 = vmatprep.subr.bf16.mxu0 0
      %425 = vmatpush1.bf16.msra.mxu0 %v361
      %426 = vmatprep.subr.bf16.mxu0 0
      %427 = vmatpush1.bf16.msra.mxu0 0
      %428 = vmatprep.subr.bf16.mxu0 0
      %429 = vmatpush1.bf16.msra.mxu0 0
      %430 = vmatprep.subr.bf16.mxu0 0
      %431 = vmatpush1.bf16.msra.mxu0 0
      %432 = vmatprep.subr.bf16.mxu0 0
      %433 = vmatpush1.bf16.msra.mxu0 0
      %434 = vmatprep.subr.bf16.mxu0 0
      %435 = vmatpush1.bf16.msra.mxu0 0
      %436 = vmatprep.subr.bf16.mxu0 0
      %437 = vmatpush1.bf16.msra.mxu0 0
      %438 = vmatprep.subr.bf16.mxu0 0
      %439 = vmatpush1.bf16.msra.mxu0 0
      %440 = vmatprep.subr.bf16.mxu0 0
      %441 = vmatpush1.bf16.msra.mxu0 0
      %442 = vmatprep.subr.bf16.mxu0 0
      %443 = vmatpush1.bf16.msra.mxu0 0
      %444 = vmatprep.subr.bf16.mxu0 0
      %445 = vmatpush1.bf16.msra.mxu0 0
      %446 = vmatprep.subr.bf16.mxu0 0
      %447 = vmatpush1.bf16.msra.mxu0 0
      %448 = vmatprep.subr.bf16.mxu0 0
      %449 = vmatpush1.bf16.msra.mxu0 0
      %450 = vmatprep.subr.bf16.mxu0 0
      %451 = vmatpush1.bf16.msra.mxu0 0
      %452 = vmatprep.mubr.bf16.mxu0 0
      %453 = vmatmul.mubr.bf16.gmra.mrb[0].mxu0 %v367
      %v454 = vpop.f32.mrb[0].mxu0
      %v455 = vadd.f32 0.0, %v454
      %v456 = vpop.f32.mrb[0].mxu0
      %v457 = vpop.f32.mrb[0].mxu0
      %v458 = vadd.f32 0.0, %v457
      %v459 = vpop.f32.mrb[0].mxu0
      %460 = vmatprep.mubr.bf16.mxu0 0
      %461 = vmatmul.mubr.bf16.gmra.mrb[0].mxu0 %v370
      %v462 = vpop.f32.mrb[0].mxu0
      %v463 = vadd.f32 0.0, %v462
      %v464 = vpop.f32.mrb[0].mxu0
      %v465 = vpop.f32.mrb[0].mxu0
      %v466 = vadd.f32 0.0, %v465
      %v467 = vpop.f32.mrb[0].mxu0
      %468 = vmatprep.mubr.bf16.mxu0 0
      %469 = vmatmul.mubr.bf16.gmra.mrb[0].mxu0 %v373
      %v470 = vpop.f32.mrb[0].mxu0
      %v471 = vadd.f32 0.0, %v470
      %v472 = vpop.f32.mrb[0].mxu0
      %v473 = vpop.f32.mrb[0].mxu0
      %v474 = vadd.f32 0.0, %v473
      %v475 = vpop.f32.mrb[0].mxu0
      %476 = vmatprep.mubr.bf16.mxu0 0
      %477 = vmatmul.mubr.bf16.gmra.mrb[0].mxu0 %v376
      %v478 = vpop.f32.mrb[0].mxu0
      %v479 = vadd.f32 0.0, %v478
      %v480 = vpop.f32.mrb[0].mxu0
      %v481 = vpop.f32.mrb[0].mxu0
      %v482 = vadd.f32 0.0, %v481
      %v483 = vpop.f32.mrb[0].mxu0
      %484 = vmatprep.mubr.bf16.mxu0 0
      %485 = vmatmul.mubr.bf16.gmra.mrb[0].mxu0 %v379
      %v486 = vpop.f32.mrb[0].mxu0
      %v487 = vadd.f32 0.0, %v486
      %v488 = vpop.f32.mrb[0].mxu0
      %v489 = vpop.f32.mrb[0].mxu0
      %v490 = vadd.f32 0.0, %v489
      %v491 = vpop.f32.mrb[0].mxu0
      %492 = vmatprep.mubr.bf16.mxu0 0
      %493 = vmatmul.mubr.bf16.gmra.mrb[0].mxu0 %v382
      %v494 = vpop.f32.mrb[0].mxu0
      %v495 = vadd.f32 0.0, %v494
      %v496 = vpop.f32.mrb[0].mxu0
      %v497 = vpop.f32.mrb[0].mxu0
      %v498 = vadd.f32 0.0, %v497
      %v499 = vpop.f32.mrb[0].mxu0
      %500 = vmatprep.mubr.bf16.mxu0 0
      %501 = vmatmul.mubr.bf16.gmra.mrb[0].mxu0 %v385
      %v502 = vpop.f32.mrb[0].mxu0
      %v503 = vadd.f32 0.0, %v502
      %v504 = vpop.f32.mrb[0].mxu0
      %v505 = vpop.f32.mrb[0].mxu0
      %v506 = vadd.f32 0.0, %v505
      %v507 = vpop.f32.mrb[0].mxu0
      %508 = vmatprep.mubr.bf16.mxu0 0
      %509 = vmatmul.mubr.bf16.gmra.mrb[0].mxu0 %v388
      %v510 = vpop.f32.mrb[0].mxu0
      %v511 = vadd.f32 0.0, %v510
      %v512 = vpop.f32.mrb[0].mxu0
      %v513 = vpop.f32.mrb[0].mxu0
      %v514 = vadd.f32 0.0, %v513
      %v515 = vpop.f32.mrb[0].mxu0
      %516 = vmatprep.mubr.bf16.mxu0 0
      %517 = vmatmul.mubr.bf16.gmra.mrb[0].mxu0 %v391
      %v518 = vpop.f32.mrb[0].mxu0
      %v519 = vadd.f32 0.0, %v518
      %v520 = vpop.f32.mrb[0].mxu0
      %v521 = vpop.f32.mrb[0].mxu0
      %v522 = vadd.f32 0.0, %v521
      %v523 = vpop.f32.mrb[0].mxu0
      %524 = vmatprep.mubr.bf16.mxu0 0
      %525 = vmatmul.mubr.bf16.gmra.mrb[0].mxu0 %v394
      %v526 = vpop.f32.mrb[0].mxu0
      %v527 = vadd.f32 0.0, %v526
      %v528 = vpop.f32.mrb[0].mxu0
      %v529 = vpop.f32.mrb[0].mxu0
      %v530 = vadd.f32 0.0, %v529
      %v531 = vpop.f32.mrb[0].mxu0
      %532 = vmatprep.mubr.bf16.mxu0 0
      %533 = vmatmul.mubr.bf16.gmra.mrb[0].mxu0 %v397
      %v534 = vpop.f32.mrb[0].mxu0
      %v535 = vadd.f32 0.0, %v534
      %v536 = vpop.f32.mrb[0].mxu0
      %v537 = vpop.f32.mrb[0].mxu0
      %v538 = vadd.f32 0.0, %v537
      %v539 = vpop.f32.mrb[0].mxu0
      %540 = vmatprep.mubr.bf16.mxu0 0
      %541 = vmatmul.mubr.bf16.gmra.mrb[0].mxu0 %v400
      %v542 = vpop.f32.mrb[0].mxu0
      %v543 = vadd.f32 0.0, %v542
      %v544 = vpop.f32.mrb[0].mxu0
      %v545 = vpop.f32.mrb[0].mxu0
      %v546 = vadd.f32 0.0, %v545
      %v547 = vpop.f32.mrb[0].mxu0
      %548 = vmatprep.mubr.bf16.mxu0 0
      %549 = vmatmul.mubr.bf16.gmra.mrb[0].mxu0 %v403
      %v550 = vpop.f32.mrb[0].mxu0
      %v551 = vadd.f32 0.0, %v550
      %v552 = vpop.f32.mrb[0].mxu0
      %v553 = vpop.f32.mrb[0].mxu0
      %v554 = vadd.f32 0.0, %v553
      %v555 = vpop.f32.mrb[0].mxu0
      %556 = vmatprep.mubr.bf16.mxu0 0
      %557 = vmatmul.mubr.bf16.gmra.mrb[0].mxu0 %v406
      %v558 = vpop.f32.mrb[0].mxu0
      %v559 = vadd.f32 0.0, %v558
      %v560 = vpop.f32.mrb[0].mxu0
      %v561 = vpop.f32.mrb[0].mxu0
      %v562 = vadd.f32 0.0, %v561
      %v563 = vpop.f32.mrb[0].mxu0
      %564 = vmatprep.mubr.bf16.mxu0 0
      %565 = vmatmul.mubr.bf16.gmra.mrb[0].mxu0 %v409
      %v566 = vpop.f32.mrb[0].mxu0
      %v567 = vadd.f32 0.0, %v566
      %v568 = vpop.f32.mrb[0].mxu0
      %v569 = vpop.f32.mrb[0].mxu0
      %v570 = vadd.f32 0.0, %v569
      %v571 = vpop.f32.mrb[0].mxu0
      %572 = vmatprep.mubr.bf16.mxu0 0
      %573 = vmatmul.mubr.bf16.gmra.mrb[0].mxu0 %v412
      %v574 = vpop.f32.mrb[0].mxu0
      %v575 = vadd.f32 0.0, %v574
      %v576 = vpop.f32.mrb[0].mxu0
      %v577 = vpop.f32.mrb[0].mxu0
      %v578 = vadd.f32 0.0, %v577
      %v579 = vpop.f32.mrb[0].mxu0
      %580 = vmatprep.mubr.bf16.mxu0 0
      %581 = vmatmul.mubr.bf16.gmra.mrb[0].mxu0 %v415
      %v582 = vpop.f32.mrb[0].mxu0
      %v583 = vadd.f32 0.0, %v582
      %v584 = vpop.f32.mrb[0].mxu0
      %v585 = vpop.f32.mrb[0].mxu0
      %v586 = vadd.f32 0.0, %v585
      %v587 = vpop.f32.mrb[0].mxu0
      %588 = vmatprep.mubr.bf16.mxu0 0
      %589 = vmatmul.mubr.bf16.gmra.mrb[0].mxu0 %v418
      %v590 = vpop.f32.mrb[0].mxu0
      %v591 = vadd.f32 0.0, %v590
      %v592 = vpop.f32.mrb[0].mxu0
      %v593 = vpop.f32.mrb[0].mxu0
      %v594 = vadd.f32 0.0, %v593
      %v595 = vpop.f32.mrb[0].mxu0
      %596 = vdwg.mxu0
      %597 = vrot.lane.b32.xlu0 %v463, 120
      %v598 = vpop.permute.xlu0 %597
      %599 = vrot.lane.b32.xlu0 %v466, 120
      %v600 = vpop.permute.xlu0 %599
      %601 = vrot.lane.b32.xlu0 %v471, 120
      %v602 = vpop.permute.xlu0 %601
      %603 = vrot.lane.b32.xlu0 %v474, 120
      %v604 = vpop.permute.xlu0 %603
      %605 = vrot.lane.b32.xlu0 %v479, 120
      %v606 = vpop.permute.xlu0 %605
      %607 = vrot.lane.b32.xlu0 %v482, 120
      %v608 = vpop.permute.xlu0 %607
      %609 = vrot.lane.b32.xlu0 %v487, 120
      %v610 = vpop.permute.xlu0 %609
      %611 = vrot.lane.b32.xlu0 %v490, 120
      %v612 = vpop.permute.xlu0 %611
      %613 = vrot.lane.b32.xlu0 %v495, 120
      %v614 = vpop.permute.xlu0 %613
      %615 = vrot.lane.b32.xlu0 %v498, 120
      %v616 = vpop.permute.xlu0 %615
      %617 = vrot.lane.b32.xlu0 %v503, 120
      %v618 = vpop.permute.xlu0 %617
      %619 = vrot.lane.b32.xlu0 %v506, 120
      %v620 = vpop.permute.xlu0 %619
      %621 = vrot.lane.b32.xlu0 %v511, 120
      %v622 = vpop.permute.xlu0 %621
      %623 = vrot.lane.b32.xlu0 %v514, 120
      %v624 = vpop.permute.xlu0 %623
      %625 = vrot.lane.b32.xlu0 %v519, 120
      %v626 = vpop.permute.xlu0 %625
      %627 = vrot.lane.b32.xlu0 %v522, 120
      %v628 = vpop.permute.xlu0 %627
      %629 = vrot.lane.b32.xlu0 %v527, 120
      %v630 = vpop.permute.xlu0 %629
      %631 = vrot.lane.b32.xlu0 %v530, 120
      %v632 = vpop.permute.xlu0 %631
      %633 = vrot.lane.b32.xlu0 %v535, 120
      %v634 = vpop.permute.xlu0 %633
      %635 = vrot.lane.b32.xlu0 %v538, 120
      %v636 = vpop.permute.xlu0 %635
      %637 = vrot.lane.b32.xlu0 %v543, 120
      %v638 = vpop.permute.xlu0 %637
      %639 = vrot.lane.b32.xlu0 %v546, 120
      %v640 = vpop.permute.xlu0 %639
      %641 = vrot.lane.b32.xlu0 %v551, 120
      %v642 = vpop.permute.xlu0 %641
      %643 = vrot.lane.b32.xlu0 %v554, 120
      %v644 = vpop.permute.xlu0 %643
      %645 = vrot.lane.b32.xlu0 %v559, 120
      %v646 = vpop.permute.xlu0 %645
      %647 = vrot.lane.b32.xlu0 %v562, 120
      %v648 = vpop.permute.xlu0 %647
      %649 = vrot.lane.b32.xlu0 %v567, 120
      %v650 = vpop.permute.xlu0 %649
      %651 = vrot.lane.b32.xlu0 %v570, 120
      %v652 = vpop.permute.xlu0 %651
      %653 = vrot.lane.b32.xlu0 %v575, 120
      %v654 = vpop.permute.xlu0 %653
      %655 = vrot.lane.b32.xlu0 %v578, 120
      %v656 = vpop.permute.xlu0 %655
      %657 = vrot.lane.b32.xlu0 %v583, 120
      %v658 = vpop.permute.xlu0 %657
      %659 = vrot.lane.b32.xlu0 %v586, 120
      %v660 = vpop.permute.xlu0 %659
      %v661 = vadd.f32 %v455, %v598
      %v662 = vadd.f32 %v458, %v600
      %v663 = vadd.f32 %v463, %v602
      %v664 = vadd.f32 %v466, %v604
      %v665 = vadd.f32 %v471, %v606
      %v666 = vadd.f32 %v474, %v608
      %v667 = vadd.f32 %v479, %v610
      %v668 = vadd.f32 %v482, %v612
      %v669 = vadd.f32 %v487, %v614
      %v670 = vadd.f32 %v490, %v616
      %v671 = vadd.f32 %v495, %v618
      %v672 = vadd.f32 %v498, %v620
      %v673 = vadd.f32 %v503, %v622
      %v674 = vadd.f32 %v506, %v624
      %v675 = vadd.f32 %v511, %v626
      %v676 = vadd.f32 %v514, %v628
      %v677 = vadd.f32 %v519, %v630
      %v678 = vadd.f32 %v522, %v632
      %v679 = vadd.f32 %v527, %v634
      %v680 = vadd.f32 %v530, %v636
      %v681 = vadd.f32 %v535, %v638
      %v682 = vadd.f32 %v538, %v640
      %v683 = vadd.f32 %v543, %v642
      %v684 = vadd.f32 %v546, %v644
      %v685 = vadd.f32 %v551, %v646
      %v686 = vadd.f32 %v554, %v648
      %v687 = vadd.f32 %v559, %v650
      %v688 = vadd.f32 %v562, %v652
      %v689 = vadd.f32 %v567, %v654
      %v690 = vadd.f32 %v570, %v656
      %v691 = vadd.f32 %v575, %v658
      %v692 = vadd.f32 %v578, %v660
      %693 = vrot.lane.b32.xlu0 %v471, 112
      %v694 = vpop.permute.xlu0 %693
      %695 = vrot.lane.b32.xlu0 %v474, 112
      %v696 = vpop.permute.xlu0 %695
      %697 = vrot.lane.b32.xlu0 %v479, 112
      %v698 = vpop.permute.xlu0 %697
      %699 = vrot.lane.b32.xlu0 %v482, 112
      %v700 = vpop.permute.xlu0 %699
      %701 = vrot.lane.b32.xlu0 %v487, 112
      %v702 = vpop.permute.xlu0 %701
      %703 = vrot.lane.b32.xlu0 %v490, 112
      %v704 = vpop.permute.xlu0 %703
      %705 = vrot.lane.b32.xlu0 %v495, 112
      %v706 = vpop.permute.xlu0 %705
      %707 = vrot.lane.b32.xlu0 %v498, 112
      %v708 = vpop.permute.xlu0 %707
      %709 = vrot.lane.b32.xlu0 %v503, 112
      %v710 = vpop.permute.xlu0 %709
      %711 = vrot.lane.b32.xlu0 %v506, 112
      %v712 = vpop.permute.xlu0 %711
      %713 = vrot.lane.b32.xlu0 %v511, 112
      %v714 = vpop.permute.xlu0 %713
      %715 = vrot.lane.b32.xlu0 %v514, 112
      %v716 = vpop.permute.xlu0 %715
      %717 = vrot.lane.b32.xlu0 %v519, 112
      %v718 = vpop.permute.xlu0 %717
      %719 = vrot.lane.b32.xlu0 %v522, 112
      %v720 = vpop.permute.xlu0 %719
      %721 = vrot.lane.b32.xlu0 %v527, 112
      %v722 = vpop.permute.xlu0 %721
      %723 = vrot.lane.b32.xlu0 %v530, 112
      %v724 = vpop.permute.xlu0 %723
      %725 = vrot.lane.b32.xlu0 %v535, 112
      %v726 = vpop.permute.xlu0 %725
      %727 = vrot.lane.b32.xlu0 %v538, 112
      %v728 = vpop.permute.xlu0 %727
      %729 = vrot.lane.b32.xlu0 %v543, 112
      %v730 = vpop.permute.xlu0 %729
      %731 = vrot.lane.b32.xlu0 %v546, 112
      %v732 = vpop.permute.xlu0 %731
      %733 = vrot.lane.b32.xlu0 %v551, 112
      %v734 = vpop.permute.xlu0 %733
      %735 = vrot.lane.b32.xlu0 %v554, 112
      %v736 = vpop.permute.xlu0 %735
      %737 = vrot.lane.b32.xlu0 %v559, 112
      %v738 = vpop.permute.xlu0 %737
      %739 = vrot.lane.b32.xlu0 %v562, 112
      %v740 = vpop.permute.xlu0 %739
      %741 = vrot.lane.b32.xlu0 %v567, 112
      %v742 = vpop.permute.xlu0 %741
      %743 = vrot.lane.b32.xlu0 %v570, 112
      %v744 = vpop.permute.xlu0 %743
      %745 = vrot.lane.b32.xlu0 %v575, 112
      %v746 = vpop.permute.xlu0 %745
      %747 = vrot.lane.b32.xlu0 %v578, 112
      %v748 = vpop.permute.xlu0 %747
      %749 = vrot.lane.b32.xlu0 %v583, 112
      %v750 = vpop.permute.xlu0 %749
      %751 = vrot.lane.b32.xlu0 %v586, 112
      %v752 = vpop.permute.xlu0 %751
      %753 = vrot.lane.b32.xlu0 %v591, 112
      %v754 = vpop.permute.xlu0 %753
      %755 = vrot.lane.b32.xlu0 %v594, 112
      %v756 = vpop.permute.xlu0 %755
      %v757 = vadd.f32 %v661, %v694
      %v758 = vadd.f32 %v662, %v696
      %v759 = vadd.f32 %v663, %v698
      %v760 = vadd.f32 %v664, %v700
      %v761 = vadd.f32 %v665, %v702
      %v762 = vadd.f32 %v666, %v704
      %v763 = vadd.f32 %v667, %v706
      %v764 = vadd.f32 %v668, %v708
      %v765 = vadd.f32 %v669, %v710
      %v766 = vadd.f32 %v670, %v712
      %v767 = vadd.f32 %v671, %v714
      %v768 = vadd.f32 %v672, %v716
      %v769 = vadd.f32 %v673, %v718
      %v770 = vadd.f32 %v674, %v720
      %v771 = vadd.f32 %v675, %v722
      %v772 = vadd.f32 %v676, %v724
      %v773 = vadd.f32 %v677, %v726
      %v774 = vadd.f32 %v678, %v728
      %v775 = vadd.f32 %v679, %v730
      %v776 = vadd.f32 %v680, %v732
      %v777 = vadd.f32 %v681, %v734
      %v778 = vadd.f32 %v682, %v736
      %v779 = vadd.f32 %v683, %v738
      %v780 = vadd.f32 %v684, %v740
      %v781 = vadd.f32 %v685, %v742
      %v782 = vadd.f32 %v686, %v744
      %v783 = vadd.f32 %v687, %v746
      %v784 = vadd.f32 %v688, %v748
      %v785 = vadd.f32 %v689, %v750
      %v786 = vadd.f32 %v690, %v752
      %v787 = vadd.f32 %v691, %v754
      %v788 = vadd.f32 %v692, %v756
      %v789 = vpack.c.bf16 %v758, %v757
      %v790 = vpack.c.bf16 %v760, %v759
      %v791 = vpack.c.bf16 %v762, %v761
      %v792 = vpack.c.bf16 %v764, %v763
      %v793 = vpack.c.bf16 %v766, %v765
      %v794 = vpack.c.bf16 %v768, %v767
      %v795 = vpack.c.bf16 %v770, %v769
      %v796 = vpack.c.bf16 %v772, %v771
      %v797 = vpack.c.bf16 %v774, %v773
      %v798 = vpack.c.bf16 %v776, %v775
      %v799 = vpack.c.bf16 %v778, %v777
      %v800 = vpack.c.bf16 %v780, %v779
      %v801 = vpack.c.bf16 %v782, %v781
      %v802 = vpack.c.bf16 %v784, %v783
      %v803 = vpack.c.bf16 %v786, %v785
      %v804 = vpack.c.bf16 %v788, %v787
      %v821 = vunpack.c.l.b16 %v789
      %v822 = vunpack.c.h.b16 %v789
      %v823 = vunpack.c.l.b16 %v790
      %v824 = vunpack.c.h.b16 %v790
      %v825 = vunpack.c.l.b16 %v791
      %v826 = vunpack.c.h.b16 %v791
      %v827 = vunpack.c.l.b16 %v792
      %v828 = vunpack.c.h.b16 %v792
      %v829 = vunpack.c.l.b16 %v793
      %v830 = vunpack.c.h.b16 %v793
      %v831 = vunpack.c.l.b16 %v794
      %v832 = vunpack.c.h.b16 %v794
      %v833 = vunpack.c.l.b16 %v795
      %v834 = vunpack.c.h.b16 %v795
      %v835 = vunpack.c.l.b16 %v796
      %v836 = vunpack.c.h.b16 %v796
      %v837 = vunpack.c.l.b16 %v797
      %v838 = vunpack.c.h.b16 %v797
      %v839 = vunpack.c.l.b16 %v798
      %v840 = vunpack.c.h.b16 %v798
      %v841 = vunpack.c.l.b16 %v799
      %v842 = vunpack.c.h.b16 %v799
      %v843 = vunpack.c.l.b16 %v800
      %v844 = vunpack.c.h.b16 %v800
      %v845 = vunpack.c.l.b16 %v801
      %v846 = vunpack.c.h.b16 %v801
      %v847 = vunpack.c.l.b16 %v802
      %v848 = vunpack.c.h.b16 %v802
      %v849 = vunpack.c.l.b16 %v803
      %v850 = vunpack.c.h.b16 %v803
      %v851 = vunpack.c.l.b16 %v804
      %v852 = vunpack.c.h.b16 %v804
      %v853 = vpack.c.b16 %v821, %v821
      %v854 = vpack.c.b16 %v822, %v822
      %v855 = vpack.c.b16 %v823, %v823
      %v856 = vpack.c.b16 %v824, %v824
      %v857 = vpack.c.b16 %v825, %v825
      %v858 = vpack.c.b16 %v826, %v826
      %v859 = vpack.c.b16 %v827, %v827
      %v860 = vpack.c.b16 %v828, %v828
      %v861 = vpack.c.b16 %v829, %v829
      %v862 = vpack.c.b16 %v830, %v830
      %v863 = vpack.c.b16 %v831, %v831
      %v864 = vpack.c.b16 %v832, %v832
      %v865 = vpack.c.b16 %v833, %v833
      %v866 = vpack.c.b16 %v834, %v834
      %v867 = vpack.c.b16 %v835, %v835
      %v868 = vpack.c.b16 %v836, %v836
      %v869 = vpack.c.b16 %v837, %v837
      %v870 = vpack.c.b16 %v838, %v838
      %v871 = vpack.c.b16 %v839, %v839
      %v872 = vpack.c.b16 %v840, %v840
      %v873 = vpack.c.b16 %v841, %v841
      %v874 = vpack.c.b16 %v842, %v842
      %v875 = vpack.c.b16 %v843, %v843
      %v876 = vpack.c.b16 %v844, %v844
      %v877 = vpack.c.b16 %v845, %v845
      %v878 = vpack.c.b16 %v846, %v846
      %v879 = vpack.c.b16 %v847, %v847
      %v880 = vpack.c.b16 %v848, %v848
      %v881 = vpack.c.b16 %v849, %v849
      %v882 = vpack.c.b16 %v850, %v850
      %v883 = vpack.c.b16 %v851, %v851
      %v884 = vpack.c.b16 %v852, %v852
      %917 = vst [vmem:[%s205] sm:$0xf] %v853
      %918 = vst [vmem:[%s205 + $0x4] sm:$0xf] %v854
      %919 = vst [vmem:[%s205 + $0x8] sm:$0xf] %v855
      %920 = vst [vmem:[%s205 + $0xc] sm:$0xf] %v856
      %921 = vst [vmem:[%s205 + $0x10] sm:$0xf] %v857
      %922 = vst [vmem:[%s205 + $0x14] sm:$0xf] %v858
      %923 = vst [vmem:[%s205 + $0x18] sm:$0xf] %v859
      %924 = vst [vmem:[%s205 + $0x1c] sm:$0xf] %v860
      %925 = vst [vmem:[%s205 + $0x20] sm:$0xf] %v861
      %926 = vst [vmem:[%s205 + $0x24] sm:$0xf] %v862
      %927 = vst [vmem:[%s205 + $0x28] sm:$0xf] %v863
      %928 = vst [vmem:[%s205 + $0x2c] sm:$0xf] %v864
      %929 = vst [vmem:[%s205 + $0x30] sm:$0xf] %v865
      %930 = vst [vmem:[%s205 + $0x34] sm:$0xf] %v866
      %931 = vst [vmem:[%s205 + $0x38] sm:$0xf] %v867
      %932 = vst [vmem:[%s205 + $0x3c] sm:$0xf] %v868
      %933 = vst [vmem:[%s205 + $0x40] sm:$0xf] %v869
      %934 = vst [vmem:[%s205 + $0x44] sm:$0xf] %v870
      %935 = vst [vmem:[%s205 + $0x48] sm:$0xf] %v871
      %936 = vst [vmem:[%s205 + $0x4c] sm:$0xf] %v872
      %937 = vst [vmem:[%s205 + $0x50] sm:$0xf] %v873
      %938 = vst [vmem:[%s205 + $0x54] sm:$0xf] %v874
      %939 = vst [vmem:[%s205 + $0x58] sm:$0xf] %v875
      %940 = vst [vmem:[%s205 + $0x5c] sm:$0xf] %v876
      %941 = vst [vmem:[%s205 + $0x60] sm:$0xf] %v877
      %942 = vst [vmem:[%s205 + $0x64] sm:$0xf] %v878
      %943 = vst [vmem:[%s205 + $0x68] sm:$0xf] %v879
      %944 = vst [vmem:[%s205 + $0x6c] sm:$0xf] %v880
      %945 = vst [vmem:[%s205 + $0x70] sm:$0xf] %v881
      %946 = vst [vmem:[%s205 + $0x74] sm:$0xf] %v882
      %947 = vst [vmem:[%s205 + $0x78] sm:$0xf] %v883
      %948 = vst [vmem:[%s205 + $0x7c] sm:$0xf] %v884
      %v949 = vadd.f32 %v757, %v758
      %v950 = vadd.f32 %v949, %v759
      %v951 = vadd.f32 %v950, %v760
      %v952 = vadd.f32 %v951, %v761
      %v953 = vadd.f32 %v952, %v762
      %v954 = vadd.f32 %v953, %v763
      %v955 = vadd.f32 %v954, %v764
      %v956 = vadd.f32 %v955, %v765
      %v957 = vadd.f32 %v956, %v766
      %v958 = vadd.f32 %v957, %v767
      %v959 = vadd.f32 %v958, %v768
      %v960 = vadd.f32 %v959, %v769
      %v961 = vadd.f32 %v960, %v770
      %v962 = vadd.f32 %v961, %v771
      %v963 = vadd.f32 %v962, %v772
      %v964 = vadd.f32 %v963, %v773
      %v965 = vadd.f32 %v964, %v774
      %v966 = vadd.f32 %v965, %v775
      %v967 = vadd.f32 %v966, %v776
      %v968 = vadd.f32 %v967, %v777
      %v969 = vadd.f32 %v968, %v778
      %v970 = vadd.f32 %v969, %v779
      %v971 = vadd.f32 %v970, %v780
      %v972 = vadd.f32 %v971, %v781
      %v973 = vadd.f32 %v972, %v782
      %v974 = vadd.f32 %v973, %v783
      %v975 = vadd.f32 %v974, %v784
      %v976 = vadd.f32 %v975, %v785
      %v977 = vadd.f32 %v976, %v786
      %v978 = vadd.f32 %v977, %v787
      %v979 = vadd.f32 %v978, %v788
      %v980 = vrot.slane %v979, 4
      %v981 = vadd.f32 %v979, %v980
      %v982 = vrot.slane %v981, 2
      %v983 = vadd.f32 %v981, %v982
      %v984 = vrot.slane %v983, 1
      %v985 = vadd.f32 %v983, %v984
      %v986 = vmul.f32 %v757, %v757
      %v987 = vmul.f32 %v758, %v758
      %v988 = vmul.f32 %v759, %v759
      %v989 = vmul.f32 %v760, %v760
      %v990 = vmul.f32 %v761, %v761
      %v991 = vmul.f32 %v762, %v762
      %v992 = vmul.f32 %v763, %v763
      %v993 = vmul.f32 %v764, %v764
      %v994 = vmul.f32 %v765, %v765
      %v995 = vmul.f32 %v766, %v766
      %v996 = vmul.f32 %v767, %v767
      %v997 = vmul.f32 %v768, %v768
      %v998 = vmul.f32 %v769, %v769
      %v999 = vmul.f32 %v770, %v770
      %v1000 = vmul.f32 %v771, %v771
      %v1001 = vmul.f32 %v772, %v772
      %v1002 = vmul.f32 %v773, %v773
      %v1003 = vmul.f32 %v774, %v774
      %v1004 = vmul.f32 %v775, %v775
      %v1005 = vmul.f32 %v776, %v776
      %v1006 = vmul.f32 %v777, %v777
      %v1007 = vmul.f32 %v778, %v778
      %v1008 = vmul.f32 %v779, %v779
      %v1009 = vmul.f32 %v780, %v780
      %v1010 = vmul.f32 %v781, %v781
      %v1011 = vmul.f32 %v782, %v782
      %v1012 = vmul.f32 %v783, %v783
      %v1013 = vmul.f32 %v784, %v784
      %v1014 = vmul.f32 %v785, %v785
      %v1015 = vmul.f32 %v786, %v786
      %v1016 = vmul.f32 %v787, %v787
      %v1017 = vmul.f32 %v788, %v788
      %v1018 = vadd.f32 %v986, %v987
      %v1019 = vadd.f32 %v1018, %v988
      %v1020 = vadd.f32 %v1019, %v989
      %v1021 = vadd.f32 %v1020, %v990
      %v1022 = vadd.f32 %v1021, %v991
      %v1023 = vadd.f32 %v1022, %v992
      %v1024 = vadd.f32 %v1023, %v993
      %v1025 = vadd.f32 %v1024, %v994
      %v1026 = vadd.f32 %v1025, %v995
      %v1027 = vadd.f32 %v1026, %v996
      %v1028 = vadd.f32 %v1027, %v997
      %v1029 = vadd.f32 %v1028, %v998
      %v1030 = vadd.f32 %v1029, %v999
      %v1031 = vadd.f32 %v1030, %v1000
      %v1032 = vadd.f32 %v1031, %v1001
      %v1033 = vadd.f32 %v1032, %v1002
      %v1034 = vadd.f32 %v1033, %v1003
      %v1035 = vadd.f32 %v1034, %v1004
      %v1036 = vadd.f32 %v1035, %v1005
      %v1037 = vadd.f32 %v1036, %v1006
      %v1038 = vadd.f32 %v1037, %v1007
      %v1039 = vadd.f32 %v1038, %v1008
      %v1040 = vadd.f32 %v1039, %v1009
      %v1041 = vadd.f32 %v1040, %v1010
      %v1042 = vadd.f32 %v1041, %v1011
      %v1043 = vadd.f32 %v1042, %v1012
      %v1044 = vadd.f32 %v1043, %v1013
      %v1045 = vadd.f32 %v1044, %v1014
      %v1046 = vadd.f32 %v1045, %v1015
      %v1047 = vadd.f32 %v1046, %v1016
      %v1048 = vadd.f32 %v1047, %v1017
      %v1049 = vrot.slane %v1048, 4
      %v1050 = vadd.f32 %v1048, %v1049
      %v1051 = vrot.slane %v1050, 2
      %v1052 = vadd.f32 %v1050, %v1051
      %v1053 = vrot.slane %v1052, 1
      %v1054 = vadd.f32 %v1052, %v1053
      %v1055 = vlaneseq
      %v1056 = vshrl.u32 %v1055, 7
      %vm1057 = vcmp.eq.s32.totalorder %v1056, 0
      %v1058 = vsel %vm1057, %v985, %v1054
      %1059 = vst [vmem:[%s212] sm:$0x3] %v1058
      %s1060 = sadd.s32 %s19, %s20
      %s1061 = smul.u32 32, %s1060
      %p1062 = scmp.lt.s32.totalorder %s1061, 63
      %s1063 = scalar_select %p1062, %s1061, 63
      %s1064 = smul.addr %s1063, 4
      %s1065 = scalar_lea.vmem %s2, %s1064
      %s1066 = sadd.s32 %s19, %s20
      %p1067 = scmp.lt.s32.totalorder %s1066, 1
      %s1068 = scalar_select %p1067, %s1066, 1
      %s1069 = smul.addr %s1068, 2
      %s1070 = scalar_lea.vmem %s3, %s1069
      // Predicated region
      $region29: #{up_forward.2} parent=27 // pred_check
        %p1071 = pneg %p96
      $region30: #{up_forward.2} parent=27 // pred_check_branch
        %1073 = sbr.rel (%p1071) target = $region32
      $region31: #{up_forward.2} parent=27 // pred_region
        %s1074 = sadd.s32 %s19, %s20
        %s1075 = smul.u32 32, %s1074
      $region32: #{up_forward.2} parent=27 // pred_fallthru
        _
      // Predicated region
      $region33: #{up_forward.2} parent=27 // pred_check
        %p1076 = pneg %p124
      $region34: #{up_forward.2} parent=27 // pred_check_branch
        %1078 = sbr.rel (%p1076) target = $region36
      $region35: #{up_forward.2} parent=27 // pred_region
        %s1079 = sadd.s32 %s19, %s20
      $region36: #{up_forward.2} parent=27 // pred_fallthru
        _
    $region28: #{up_forward.2} parent=5 // pred_fallthru
      _
    %p1080 = scmp.le.s32.totalorder 2, %s10
    // Predicated region
    $region37: #{up_forward.2} parent=5 // pred_check
      %p1081 = pneg %p1080
    $region38: #{up_forward.2} parent=5 // pred_check_branch
      %1083 = sbr.rel (%p1081) target = $region40
    $region39: #{up_forward.2} parent=5 // pred_region
      %s1084 = ssub.s32 %s10, 2
      // Predicated region
      $region41: #{up_forward.2} parent=39 // pred_check
        %p1085 = pneg %p102
      $region42: #{up_forward.2} parent=39 // pred_check_branch
        %1087 = sbr.rel (%p1085) target = $region44
      $region43: #{up_forward.2} parent=39 // pred_region
        %s1088 = sadd.s32 %s21, %s22
        %s1089 = smul.u32 32, %s1088
        %p1090 = scmp.lt.s32.totalorder %s1089, 63
        %s1091 = scalar_select %p1090, %s1089, 63
        %s1092 = smul.addr %s1091, 4
        %s1093 = scalar_lea.vmem %s2, %s1092
      $region44: #{up_forward.2} parent=39 // pred_fallthru
        _
      // Predicated region
      $region45: #{up_forward.2} parent=39 // pred_check
        %p1094 = pneg %p130
      $region46: #{up_forward.2} parent=39 // pred_check_branch
        %1096 = sbr.rel (%p1094) target = $region48
      $region47: #{up_forward.2} parent=39 // pred_region
        %s1097 = sadd.s32 %s21, %s22
        %p1098 = scmp.lt.s32.totalorder %s1097, 1
        %s1099 = scalar_select %p1098, %s1097, 1
        %s1100 = smul.addr %s1099, 2
        %s1101 = scalar_lea.vmem %s3, %s1100
      $region48: #{up_forward.2} parent=39 // pred_fallthru
        _
    $region40: #{up_forward.2} parent=5 // pred_fallthru
      _
  $region6: #{up_forward.2} parent=0 // loop_footer
    %s14 = sadd.s32 1, %s10
  $region7: #{up_forward.2} parent=0 // loop_footer_branch
    %9 = sbr.rel target = $region3
  $region8: #{up_forward.2} parent=0 // loop_exit
    _

// kernel: up_forward.3
$region0: #{up_forward.3}
  #allocation0 [shape = 'u32[]', space=smem, size = 0x4, offset = 0x4, fixed_abs, tag = 'smem constant byte address 0x4 - core index']
  #allocation1 [shape = 'u32[144,128]{1,0:T(1,128)}', space=vmem, size = 0x12000, scoped, tag = 'internal scratch']
  %s0 = inlined_call_operand.vmem [shape: bf16[576,24], index: 0, kind: input, shape index: {}]
  %s1 = inlined_call_operand.vmem [shape: bf16[24,128], index: 1, kind: input, shape index: {}]
  %s2 = inlined_call_operand.vmem [shape: bf16[512,128], index: 2, kind: output, shape index: {0}]
  %s3 = inlined_call_operand.vmem [shape: f32[2,2,128], index: 3, kind: output, shape index: {1}]
  %4 = xla_tuple %s2, %s3
  %s5 = sld [smem:[#allocation0]]
  $region49: #{up_forward.3} parent=0
    _
  %s7 = ssub.s32 1, %s5
  %s8 = scalar_select 0, %s7, %s5
  loop: start=0, step=1, limit=4
  $region2: #{up_forward.3} parent=0 // loop_pre_header
    _
  $region3: #{up_forward.3} parent=0 // loop_header
    %s10 = sphi 0, %s14
    %p11 = scmp.ge.s32.totalorder %s10, 4
    %s17 = sphi 0, %s29
    %s18 = sphi 0, %s25
    %s19 = sphi 0, %s17
    %s20 = sphi 0, %s18
    %s21 = sphi 0, %s19
    %s22 = sphi 0, %s20
    %s34 = sphi 0, %s36
    %s37 = sphi 0, %s34
    %s38 = sphi 0, %s37
    %s54 = sphi 0, %s38
    %s58 = sphi 0, %s58
    %s60 = sphi 0, %s58
    %s61 = sphi 0, %s60
    %s75 = sphi 0, %s61
    %s83 = sphi 0, %s85
    %s86 = sphi 0, %s83
    %s87 = sphi 0, %s86
    %s103 = sphi 0, %s87
    %s111 = sphi 0, %s113
    %s114 = sphi 0, %s111
    %s115 = sphi 0, %s114
    %s131 = sphi 0, %s115
  $region4: #{up_forward.3} parent=0 // loop_header_branch
    %13 = sbr.rel (%p11) target = $region8
  $region5: #{up_forward.3} parent=0 // loop_body
    %s15 = ssub.s32 %s10, 1
    %s16 = ssub.s32 %s10, 2
    %s23 = sadd.s32 1, %s18
    %p24 = scmp.ge.s32.totalorder %s23, 1
    %s25 = scalar_select %p24, 0, %s23
    %s26 = sadd.s32 1, %s17
    %s27 = scalar_select %p24, %s26, %s17
    %p28 = scmp.ge.s32.totalorder %s27, 2
    %s29 = scalar_select %p28, 0, %s27
    %s30 = sadd.s32 %s17, %s18
    %s31 = sadd.s32 %s29, %s25
    %s32 = ssub.s32 %s30, %s31
    %p33 = scmp.eq.s32.totalorder %s32, 0
    %s35 = sadd.s32 %s34, 1
    %s36 = scalar_select %p33, %s34, %s35
    %p39 = pneg %p33
    %p40 = scmp.eq.s32.totalorder %s10, 1
    %p41 = por %p39, %p40
    %p42 = scmp.ne.s32.totalorder %s34, %s37
    %p43 = scmp.eq.s32.totalorder %s10, 0
    %p44 = por %p42, %p43
    %p45 = scmp.ne.s32.totalorder %s34, %s37
    %p46 = scmp.eq.s32.totalorder %s15, 1
    %p47 = por %p45, %p46
    %p48 = scmp.ne.s32.totalorder %s37, %s38
    %p49 = scmp.eq.s32.totalorder %s15, 0
    %p50 = por %p48, %p49
    %p51 = scmp.ne.s32.totalorder %s37, %s38
    %p52 = scmp.eq.s32.totalorder %s16, 1
    %p53 = por %p51, %p52
    %p55 = scmp.ne.s32.totalorder %s38, %s54
    %p56 = scmp.eq.s32.totalorder %s16, 0
    %p57 = por %p55, %p56
    %s59 = sadd.s32 %s58, 1
    %p62 = scmp.eq.s32.totalorder %s10, 1
    %p63 = scmp.ne.s32.totalorder %s58, %s60
    %p64 = scmp.eq.s32.totalorder %s10, 0
    %p65 = por %p63, %p64
    %p66 = scmp.ne.s32.totalorder %s58, %s60
    %p67 = scmp.eq.s32.totalorder %s15, 1
    %p68 = por %p66, %p67
    %p69 = scmp.ne.s32.totalorder %s60, %s61
    %p70 = scmp.eq.s32.totalorder %s15, 0
    %p71 = por %p69, %p70
    %p72 = scmp.ne.s32.totalorder %s60, %s61
    %p73 = scmp.eq.s32.totalorder %s16, 1
    %p74 = por %p72, %p73
    %p76 = scmp.ne.s32.totalorder %s61, %s75
    %p77 = scmp.eq.s32.totalorder %s16, 0
    %p78 = por %p76, %p77
    %s79 = sadd.s32 %s17, %s18
    %s80 = sadd.s32 %s29, %s25
    %s81 = ssub.s32 %s79, %s80
    %p82 = scmp.eq.s32.totalorder %s81, 0
    %s84 = sadd.s32 %s83, 1
    %s85 = scalar_select %p82, %s83, %s84
    %p88 = pneg %p82
    %p89 = scmp.eq.s32.totalorder %s10, 1
    %p90 = por %p88, %p89
    %p91 = scmp.ne.s32.totalorder %s83, %s86
    %p92 = scmp.eq.s32.totalorder %s10, 0
    %p93 = por %p91, %p92
    %p94 = scmp.ne.s32.totalorder %s83, %s86
    %p95 = scmp.eq.s32.totalorder %s15, 1
    %p96 = por %p94, %p95
    %p97 = scmp.ne.s32.totalorder %s86, %s87
    %p98 = scmp.eq.s32.totalorder %s15, 0
    %p99 = por %p97, %p98
    %p100 = scmp.ne.s32.totalorder %s86, %s87
    %p101 = scmp.eq.s32.totalorder %s16, 1
    %p102 = por %p100, %p101
    %p104 = scmp.ne.s32.totalorder %s87, %s103
    %p105 = scmp.eq.s32.totalorder %s16, 0
    %p106 = por %p104, %p105
    %s107 = sadd.s32 %s17, %s18
    %s108 = sadd.s32 %s29, %s25
    %s109 = ssub.s32 %s107, %s108
    %p110 = scmp.eq.s32.totalorder %s109, 0
    %s112 = sadd.s32 %s111, 1
    %s113 = scalar_select %p110, %s111, %s112
    %p116 = pneg %p110
    %p117 = scmp.eq.s32.totalorder %s10, 1
    %p118 = por %p116, %p117
    %p119 = scmp.ne.s32.totalorder %s111, %s114
    %p120 = scmp.eq.s32.totalorder %s10, 0
    %p121 = por %p119, %p120
    %p122 = scmp.ne.s32.totalorder %s111, %s114
    %p123 = scmp.eq.s32.totalorder %s15, 1
    %p124 = por %p122, %p123
    %p125 = scmp.ne.s32.totalorder %s114, %s115
    %p126 = scmp.eq.s32.totalorder %s15, 0
    %p127 = por %p125, %p126
    %p128 = scmp.ne.s32.totalorder %s114, %s115
    %p129 = scmp.eq.s32.totalorder %s16, 1
    %p130 = por %p128, %p129
    %p132 = scmp.ne.s32.totalorder %s115, %s131
    %p133 = scmp.eq.s32.totalorder %s16, 0
    %p134 = por %p132, %p133
    %p135 = scmp.le.s32.totalorder 1, %s10
    %p136 = scmp.lt.s32.totalorder %s10, 3
    %p137 = pnand %p135, %p136
    %p138 = pneg %p137
    // Predicated region
    $region9: #{up_forward.3} parent=5 // pred_check
      _
    $region10: #{up_forward.3} parent=5 // pred_check_branch
      %140 = sbr.rel (%p137) target = $region12
    $region11: #{up_forward.3} parent=5 // pred_region
      %s141 = ssub.s32 %s10, 1
      // Predicated region
      $region13: #{up_forward.3} parent=11 // pred_check
        %p142 = pneg %p71
      $region14: #{up_forward.3} parent=11 // pred_check_branch
        %144 = sbr.rel (%p142) target = $region16
      $region15: #{up_forward.3} parent=11 // pred_region
        _
      $region16: #{up_forward.3} parent=11 // pred_fallthru
        _
    $region12: #{up_forward.3} parent=5 // pred_fallthru
      _
    %p145 = scmp.lt.s32.totalorder %s10, 2
    // Predicated region
    $region17: #{up_forward.3} parent=5 // pred_check
      %p146 = pneg %p145
    $region18: #{up_forward.3} parent=5 // pred_check_branch
      %148 = sbr.rel (%p146) target = $region20
    $region19: #{up_forward.3} parent=5 // pred_region
      // Predicated region
      $region21: #{up_forward.3} parent=19 // pred_check
        %p149 = pneg %p44
      $region22: #{up_forward.3} parent=19 // pred_check_branch
        %151 = sbr.rel (%p149) target = $region24
      $region23: #{up_forward.3} parent=19 // pred_region
        %s152 = sadd.s32 %s17, %s18
        %s153 = smul.u32 36, %s152
        %p154 = scmp.lt.s32.totalorder %s153, 71
        %s155 = scalar_select %p154, %s153, 71
        %s156 = smul.addr %s155, 4
        %s157 = scalar_lea.vmem %s0, %s156
        %s158 = sadd.s32 %s17, %s18
        %s159 = smul.u32 36, %s158
      $region24: #{up_forward.3} parent=19 // pred_fallthru
        _
    $region20: #{up_forward.3} parent=5 // pred_fallthru
      _
    %p160 = scmp.le.s32.totalorder 1, %s10
    %p161 = scmp.lt.s32.totalorder %s10, 3
    %p162 = pnand %p160, %p161
    %p163 = pneg %p162
    // Predicated region
    $region25: #{up_forward.3} parent=5 // pred_check
      _
    $region26: #{up_forward.3} parent=5 // pred_check_branch
      %165 = sbr.rel (%p162) target = $region28
    $region27: #{up_forward.3} parent=5 // pred_region
      %s166 = ssub.s32 %s10, 1
      %s167 = sadd.s32 %s19, %s20
      %s168 = smul.u32 36, %s167
      %p169 = scmp.lt.s32.totalorder %s168, 71
      %s170 = scalar_select %p169, %s168, 71
      %s171 = smul.addr %s170, 4
      %s172 = scalar_lea.vmem %s0, %s171
      %p173 = pneg %p50
      %p174 = pneg %p47
      %p175 = pneg %p71
      %p176 = pneg %p68
      %p177 = pneg %p99
      %p178 = pneg %p96
      %s179 = sadd.s32 %s19, %s20
      %s180 = smul.u32 32, %s179
      %p181 = scmp.lt.s32.totalorder %s180, 63
      %s182 = scalar_select %p181, %s180, 63
      %s183 = smul.addr %s182, 4
      %s184 = scalar_lea.vmem %s2, %s183
      %p185 = pneg %p127
      %p186 = pneg %p124
      %s187 = sadd.s32 %s19, %s20
      %p188 = scmp.lt.s32.totalorder %s187, 1
      %s189 = scalar_select %p188, %s187, 1
      %s190 = smul.addr %s189, 2
      %s191 = scalar_lea.vmem %s3, %s190
      %s192 = sadd.s32 %s19, %s20
      %s193 = smul.u32 36, %s192
      %p194 = scmp.lt.s32.totalorder %s193, 71
      %s195 = scalar_select %p194, %s193, 71
      %s196 = smul.addr %s195, 4
      %s197 = scalar_lea.vmem %s0, %s196
      %s198 = sadd.s32 %s19, %s20
      %s199 = smul.u32 36, %s198
      %s200 = sadd.s32 %s19, %s20
      %s201 = smul.u32 32, %s200
      %p202 = scmp.lt.s32.totalorder %s201, 63
      %s203 = scalar_select %p202, %s201, 63
      %s204 = smul.addr %s203, 4
      %s205 = scalar_lea.vmem %s2, %s204
      %s206 = sadd.s32 %s19, %s20
      %s207 = smul.u32 32, %s206
      %s208 = sadd.s32 %s19, %s20
      %p209 = scmp.lt.s32.totalorder %s208, 1
      %s210 = scalar_select %p209, %s208, 1
      %s211 = smul.addr %s210, 2
      %s212 = scalar_lea.vmem %s3, %s211
      %s213 = sadd.s32 %s19, %s20
      %v215 = vld [vmem:[%s197] sm:$0xf]
      %v216 = vld [vmem:[%s197 + $0x4] sm:$0xf]
      %v217 = vld [vmem:[%s197 + $0x8] sm:$0xf]
      %v218 = vld [vmem:[%s197 + $0xc] sm:$0xf]
      %v219 = vld [vmem:[%s197 + $0x10] sm:$0xf]
      %v220 = vld [vmem:[%s197 + $0x14] sm:$0xf]
      %v221 = vld [vmem:[%s197 + $0x18] sm:$0xf]
      %v222 = vld [vmem:[%s197 + $0x1c] sm:$0xf]
      %v223 = vld [vmem:[%s197 + $0x20] sm:$0xf]
      %v224 = vld [vmem:[%s197 + $0x24] sm:$0xf]
      %v225 = vld [vmem:[%s197 + $0x28] sm:$0xf]
      %v226 = vld [vmem:[%s197 + $0x2c] sm:$0xf]
      %v227 = vld [vmem:[%s197 + $0x30] sm:$0xf]
      %v228 = vld [vmem:[%s197 + $0x34] sm:$0xf]
      %v229 = vld [vmem:[%s197 + $0x38] sm:$0xf]
      %v230 = vld [vmem:[%s197 + $0x3c] sm:$0xf]
      %v231 = vld [vmem:[%s197 + $0x40] sm:$0xf]
      %v232 = vld [vmem:[%s197 + $0x44] sm:$0xf]
      %v233 = vld [vmem:[%s197 + $0x48] sm:$0xf]
      %v234 = vld [vmem:[%s197 + $0x4c] sm:$0xf]
      %v235 = vld [vmem:[%s197 + $0x50] sm:$0xf]
      %v236 = vld [vmem:[%s197 + $0x54] sm:$0xf]
      %v237 = vld [vmem:[%s197 + $0x58] sm:$0xf]
      %v238 = vld [vmem:[%s197 + $0x5c] sm:$0xf]
      %v239 = vld [vmem:[%s197 + $0x60] sm:$0xf]
      %v240 = vld [vmem:[%s197 + $0x64] sm:$0xf]
      %v241 = vld [vmem:[%s197 + $0x68] sm:$0xf]
      %v242 = vld [vmem:[%s197 + $0x6c] sm:$0xf]
      %v243 = vld [vmem:[%s197 + $0x70] sm:$0xf]
      %v244 = vld [vmem:[%s197 + $0x74] sm:$0xf]
      %v245 = vld [vmem:[%s197 + $0x78] sm:$0xf]
      %v246 = vld [vmem:[%s197 + $0x7c] sm:$0xf]
      %v247 = vld [vmem:[%s197 + $0x80] sm:$0xf]
      %v248 = vld [vmem:[%s197 + $0x84] sm:$0xf]
      %v249 = vld [vmem:[%s197 + $0x88] sm:$0xf]
      %v250 = vld [vmem:[%s197 + $0x8c] sm:$0xf]
      %v251 = vld [vmem:[%s1] sm:$0xf]
      %v252 = vld [vmem:[%s1 + $0x4] sm:$0xf]
      %v253 = vld [vmem:[%s1 + $0x8] sm:$0xf]
      %v290 = vunpack.c.l.b16 %v215
      %v291 = vunpack.c.l.b16 %v216
      %v292 = vunpack.c.l.b16 %v217
      %v293 = vunpack.c.l.b16 %v218
      %v294 = vunpack.c.l.b16 %v219
      %v295 = vunpack.c.l.b16 %v220
      %v296 = vunpack.c.l.b16 %v221
      %v297 = vunpack.c.l.b16 %v222
      %v298 = vunpack.c.l.b16 %v223
      %v299 = vunpack.c.l.b16 %v224
      %v300 = vunpack.c.l.b16 %v225
      %v301 = vunpack.c.l.b16 %v226
      %v302 = vunpack.c.l.b16 %v227
      %v303 = vunpack.c.l.b16 %v228
      %v304 = vunpack.c.l.b16 %v229
      %v305 = vunpack.c.l.b16 %v230
      %v306 = vunpack.c.l.b16 %v231
      %v307 = vunpack.c.l.b16 %v232
      %v308 = vunpack.c.l.b16 %v233
      %v309 = vunpack.c.l.b16 %v234
      %v310 = vunpack.c.l.b16 %v235
      %v311 = vunpack.c.l.b16 %v236
      %v312 = vunpack.c.l.b16 %v237
      %v313 = vunpack.c.l.b16 %v238
      %v314 = vunpack.c.l.b16 %v239
      %v315 = vunpack.c.l.b16 %v240
      %v316 = vunpack.c.l.b16 %v241
      %v317 = vunpack.c.l.b16 %v242
      %v318 = vunpack.c.l.b16 %v243
      %v319 = vunpack.c.l.b16 %v244
      %v320 = vunpack.c.l.b16 %v245
      %v321 = vunpack.c.l.b16 %v246
      %v322 = vunpack.c.l.b16 %v247
      %v323 = vunpack.c.l.b16 %v248
      %v324 = vunpack.c.l.b16 %v249
      %v325 = vunpack.c.l.b16 %v250
      %v326 = vpack.c.b16 %v291, %v290
      %v327 = vpack.c.b16 %v293, %v292
      %v328 = vpack.c.b16 %v295, %v294
      %v329 = vpack.c.b16 %v297, %v296
      %v330 = vpack.c.b16 %v299, %v298
      %v331 = vpack.c.b16 %v301, %v300
      %v332 = vpack.c.b16 %v303, %v302
      %v333 = vpack.c.b16 %v305, %v304
      %v334 = vpack.c.b16 %v307, %v306
      %v335 = vpack.c.b16 %v309, %v308
      %v336 = vpack.c.b16 %v311, %v310
      %v337 = vpack.c.b16 %v313, %v312
      %v338 = vpack.c.b16 %v315, %v314
      %v339 = vpack.c.b16 %v317, %v316
      %v340 = vpack.c.b16 %v319, %v318
      %v341 = vpack.c.b16 %v321, %v320
      %v342 = vpack.c.b16 %v323, %v322
      %v343 = vpack.c.b16 %v325, %v324
      %v347 = vunpack.c.l.b16 %v251
      %v348 = vunpack.c.l.b16 %v252
      %v349 = vunpack.c.l.b16 %v253
      %v350 = vpack.c.b16 %v348, %v347
      %v351 = vpack.c.b16 %v349, %v349
      %vm353 = vcmask 195584
      %v355 = vsel %vm353, %v326, 0
      %v358 = vsel %vm353, %v327, 0
      %v361 = vsel %vm353, %v328, 0
      %v364 = vsel %vm353, %v329, 0
      %v367 = vsel %vm353, %v330, 0
      %v370 = vsel %vm353, %v331, 0
      %v373 = vsel %vm353, %v332, 0
      %v376 = vsel %vm353, %v333, 0
      %v379 = vsel %vm353, %v334, 0
      %v382 = vsel %vm353, %v335, 0
      %v385 = vsel %vm353, %v336, 0
      %v388 = vsel %vm353, %v337, 0
      %v391 = vsel %vm353, %v338, 0
      %v394 = vsel %vm353, %v339, 0
      %v397 = vsel %vm353, %v340, 0
      %v400 = vsel %vm353, %v341, 0
      %v403 = vsel %vm353, %v342, 0
      %v406 = vsel %vm353, %v343, 0
      %vm408 = vcmask 1043456
      %v410 = vsel %vm408, %v351, 0
      %412 = vmatprep.subr.bf16.mxu0 0
      %413 = vmatpush1.bf16.msra.mxu0 %v350
      %414 = vmatprep.subr.bf16.mxu0 0
      %415 = vmatpush1.bf16.msra.mxu0 %v410
      %416 = vmatprep.subr.bf16.mxu0 0
      %417 = vmatpush1.bf16.msra.mxu0 0
      %418 = vmatprep.subr.bf16.mxu0 0
      %419 = vmatpush1.bf16.msra.mxu0 0
      %420 = vmatprep.subr.bf16.mxu0 0
      %421 = vmatpush1.bf16.msra.mxu0 0
      %422 = vmatprep.subr.bf16.mxu0 0
      %423 = vmatpush1.bf16.msra.mxu0 0
      %424 = vmatprep.subr.bf16.mxu0 0
      %425 = vmatpush1.bf16.msra.mxu0 0
      %426 = vmatprep.subr.bf16.mxu0 0
      %427 = vmatpush1.bf16.msra.mxu0 0
      %428 = vmatprep.subr.bf16.mxu0 0
      %429 = vmatpush1.bf16.msra.mxu0 0
      %430 = vmatprep.subr.bf16.mxu0 0
      %431 = vmatpush1.bf16.msra.mxu0 0
      %432 = vmatprep.subr.bf16.mxu0 0
      %433 = vmatpush1.bf16.msra.mxu0 0
      %434 = vmatprep.subr.bf16.mxu0 0
      %435 = vmatpush1.bf16.msra.mxu0 0
      %436 = vmatprep.subr.bf16.mxu0 0
      %437 = vmatpush1.bf16.msra.mxu0 0
      %438 = vmatprep.subr.bf16.mxu0 0
      %439 = vmatpush1.bf16.msra.mxu0 0
      %440 = vmatprep.subr.bf16.mxu0 0
      %441 = vmatpush1.bf16.msra.mxu0 0
      %442 = vmatprep.subr.bf16.mxu0 0
      %443 = vmatpush1.bf16.msra.mxu0 0
      %444 = vmatprep.mubr.bf16.mxu0 0
      %445 = vmatmul.mubr.bf16.gmra.mrb[0].mxu0 %v355
      %v446 = vpop.f32.mrb[0].mxu0
      %v447 = vadd.f32 0.0, %v446
      %v448 = vpop.f32.mrb[0].mxu0
      %v449 = vpop.f32.mrb[0].mxu0
      %v450 = vadd.f32 0.0, %v449
      %v451 = vpop.f32.mrb[0].mxu0
      %452 = vmatprep.mubr.bf16.mxu0 0
      %453 = vmatmul.mubr.bf16.gmra.mrb[0].mxu0 %v358
      %v454 = vpop.f32.mrb[0].mxu0
      %v455 = vadd.f32 0.0, %v454
      %v456 = vpop.f32.mrb[0].mxu0
      %v457 = vpop.f32.mrb[0].mxu0
      %v458 = vadd.f32 0.0, %v457
      %v459 = vpop.f32.mrb[0].mxu0
      %460 = vmatprep.mubr.bf16.mxu0 0
      %461 = vmatmul.mubr.bf16.gmra.mrb[0].mxu0 %v361
      %v462 = vpop.f32.mrb[0].mxu0
      %v463 = vadd.f32 0.0, %v462
      %v464 = vpop.f32.mrb[0].mxu0
      %v465 = vpop.f32.mrb[0].mxu0
      %v466 = vadd.f32 0.0, %v465
      %v467 = vpop.f32.mrb[0].mxu0
      %468 = vmatprep.mubr.bf16.mxu0 0
      %469 = vmatmul.mubr.bf16.gmra.mrb[0].mxu0 %v364
      %v470 = vpop.f32.mrb[0].mxu0
      %v471 = vadd.f32 0.0, %v470
      %v472 = vpop.f32.mrb[0].mxu0
      %v473 = vpop.f32.mrb[0].mxu0
      %v474 = vadd.f32 0.0, %v473
      %v475 = vpop.f32.mrb[0].mxu0
      %476 = vmatprep.mubr.bf16.mxu0 0
      %477 = vmatmul.mubr.bf16.gmra.mrb[0].mxu0 %v367
      %v478 = vpop.f32.mrb[0].mxu0
      %v479 = vadd.f32 0.0, %v478
      %v480 = vpop.f32.mrb[0].mxu0
      %v481 = vpop.f32.mrb[0].mxu0
      %v482 = vadd.f32 0.0, %v481
      %v483 = vpop.f32.mrb[0].mxu0
      %484 = vmatprep.mubr.bf16.mxu0 0
      %485 = vmatmul.mubr.bf16.gmra.mrb[0].mxu0 %v370
      %v486 = vpop.f32.mrb[0].mxu0
      %v487 = vadd.f32 0.0, %v486
      %v488 = vpop.f32.mrb[0].mxu0
      %v489 = vpop.f32.mrb[0].mxu0
      %v490 = vadd.f32 0.0, %v489
      %v491 = vpop.f32.mrb[0].mxu0
      %492 = vmatprep.mubr.bf16.mxu0 0
      %493 = vmatmul.mubr.bf16.gmra.mrb[0].mxu0 %v373
      %v494 = vpop.f32.mrb[0].mxu0
      %v495 = vadd.f32 0.0, %v494
      %v496 = vpop.f32.mrb[0].mxu0
      %v497 = vpop.f32.mrb[0].mxu0
      %v498 = vadd.f32 0.0, %v497
      %v499 = vpop.f32.mrb[0].mxu0
      %500 = vmatprep.mubr.bf16.mxu0 0
      %501 = vmatmul.mubr.bf16.gmra.mrb[0].mxu0 %v376
      %v502 = vpop.f32.mrb[0].mxu0
      %v503 = vadd.f32 0.0, %v502
      %v504 = vpop.f32.mrb[0].mxu0
      %v505 = vpop.f32.mrb[0].mxu0
      %v506 = vadd.f32 0.0, %v505
      %v507 = vpop.f32.mrb[0].mxu0
      %508 = vmatprep.mubr.bf16.mxu0 0
      %509 = vmatmul.mubr.bf16.gmra.mrb[0].mxu0 %v379
      %v510 = vpop.f32.mrb[0].mxu0
      %v511 = vadd.f32 0.0, %v510
      %v512 = vpop.f32.mrb[0].mxu0
      %v513 = vpop.f32.mrb[0].mxu0
      %v514 = vadd.f32 0.0, %v513
      %v515 = vpop.f32.mrb[0].mxu0
      %516 = vmatprep.mubr.bf16.mxu0 0
      %517 = vmatmul.mubr.bf16.gmra.mrb[0].mxu0 %v382
      %v518 = vpop.f32.mrb[0].mxu0
      %v519 = vadd.f32 0.0, %v518
      %v520 = vpop.f32.mrb[0].mxu0
      %v521 = vpop.f32.mrb[0].mxu0
      %v522 = vadd.f32 0.0, %v521
      %v523 = vpop.f32.mrb[0].mxu0
      %524 = vmatprep.mubr.bf16.mxu0 0
      %525 = vmatmul.mubr.bf16.gmra.mrb[0].mxu0 %v385
      %v526 = vpop.f32.mrb[0].mxu0
      %v527 = vadd.f32 0.0, %v526
      %v528 = vpop.f32.mrb[0].mxu0
      %v529 = vpop.f32.mrb[0].mxu0
      %v530 = vadd.f32 0.0, %v529
      %v531 = vpop.f32.mrb[0].mxu0
      %532 = vmatprep.mubr.bf16.mxu0 0
      %533 = vmatmul.mubr.bf16.gmra.mrb[0].mxu0 %v388
      %v534 = vpop.f32.mrb[0].mxu0
      %v535 = vadd.f32 0.0, %v534
      %v536 = vpop.f32.mrb[0].mxu0
      %v537 = vpop.f32.mrb[0].mxu0
      %v538 = vadd.f32 0.0, %v537
      %v539 = vpop.f32.mrb[0].mxu0
      %540 = vmatprep.mubr.bf16.mxu0 0
      %541 = vmatmul.mubr.bf16.gmra.mrb[0].mxu0 %v391
      %v542 = vpop.f32.mrb[0].mxu0
      %v543 = vadd.f32 0.0, %v542
      %v544 = vpop.f32.mrb[0].mxu0
      %v545 = vpop.f32.mrb[0].mxu0
      %v546 = vadd.f32 0.0, %v545
      %v547 = vpop.f32.mrb[0].mxu0
      %548 = vmatprep.mubr.bf16.mxu0 0
      %549 = vmatmul.mubr.bf16.gmra.mrb[0].mxu0 %v394
      %v550 = vpop.f32.mrb[0].mxu0
      %v551 = vadd.f32 0.0, %v550
      %v552 = vpop.f32.mrb[0].mxu0
      %v553 = vpop.f32.mrb[0].mxu0
      %v554 = vadd.f32 0.0, %v553
      %v555 = vpop.f32.mrb[0].mxu0
      %556 = vmatprep.mubr.bf16.mxu0 0
      %557 = vmatmul.mubr.bf16.gmra.mrb[0].mxu0 %v397
      %v558 = vpop.f32.mrb[0].mxu0
      %v559 = vadd.f32 0.0, %v558
      %v560 = vpop.f32.mrb[0].mxu0
      %v561 = vpop.f32.mrb[0].mxu0
      %v562 = vadd.f32 0.0, %v561
      %v563 = vpop.f32.mrb[0].mxu0
      %564 = vmatprep.mubr.bf16.mxu0 0
      %565 = vmatmul.mubr.bf16.gmra.mrb[0].mxu0 %v400
      %v566 = vpop.f32.mrb[0].mxu0
      %v567 = vadd.f32 0.0, %v566
      %v568 = vpop.f32.mrb[0].mxu0
      %v569 = vpop.f32.mrb[0].mxu0
      %v570 = vadd.f32 0.0, %v569
      %v571 = vpop.f32.mrb[0].mxu0
      %572 = vmatprep.mubr.bf16.mxu0 0
      %573 = vmatmul.mubr.bf16.gmra.mrb[0].mxu0 %v403
      %v574 = vpop.f32.mrb[0].mxu0
      %v575 = vadd.f32 0.0, %v574
      %v576 = vpop.f32.mrb[0].mxu0
      %v577 = vpop.f32.mrb[0].mxu0
      %v578 = vadd.f32 0.0, %v577
      %v579 = vpop.f32.mrb[0].mxu0
      %580 = vmatprep.mubr.bf16.mxu0 0
      %581 = vmatmul.mubr.bf16.gmra.mrb[0].mxu0 %v406
      %v582 = vpop.f32.mrb[0].mxu0
      %v583 = vadd.f32 0.0, %v582
      %v584 = vpop.f32.mrb[0].mxu0
      %v585 = vpop.f32.mrb[0].mxu0
      %v586 = vadd.f32 0.0, %v585
      %v587 = vpop.f32.mrb[0].mxu0
      %588 = vdwg.mxu0
      %589 = vrot.lane.b32.xlu0 %v455, 120
      %v590 = vpop.permute.xlu0 %589
      %591 = vrot.lane.b32.xlu0 %v458, 120
      %v592 = vpop.permute.xlu0 %591
      %593 = vrot.lane.b32.xlu0 %v463, 120
      %v594 = vpop.permute.xlu0 %593
      %595 = vrot.lane.b32.xlu0 %v466, 120
      %v596 = vpop.permute.xlu0 %595
      %597 = vrot.lane.b32.xlu0 %v471, 120
      %v598 = vpop.permute.xlu0 %597
      %599 = vrot.lane.b32.xlu0 %v474, 120
      %v600 = vpop.permute.xlu0 %599
      %601 = vrot.lane.b32.xlu0 %v479, 120
      %v602 = vpop.permute.xlu0 %601
      %603 = vrot.lane.b32.xlu0 %v482, 120
      %v604 = vpop.permute.xlu0 %603
      %605 = vrot.lane.b32.xlu0 %v487, 120
      %v606 = vpop.permute.xlu0 %605
      %607 = vrot.lane.b32.xlu0 %v490, 120
      %v608 = vpop.permute.xlu0 %607
      %609 = vrot.lane.b32.xlu0 %v495, 120
      %v610 = vpop.permute.xlu0 %609
      %611 = vrot.lane.b32.xlu0 %v498, 120
      %v612 = vpop.permute.xlu0 %611
      %613 = vrot.lane.b32.xlu0 %v503, 120
      %v614 = vpop.permute.xlu0 %613
      %615 = vrot.lane.b32.xlu0 %v506, 120
      %v616 = vpop.permute.xlu0 %615
      %617 = vrot.lane.b32.xlu0 %v511, 120
      %v618 = vpop.permute.xlu0 %617
      %619 = vrot.lane.b32.xlu0 %v514, 120
      %v620 = vpop.permute.xlu0 %619
      %621 = vrot.lane.b32.xlu0 %v519, 120
      %v622 = vpop.permute.xlu0 %621
      %623 = vrot.lane.b32.xlu0 %v522, 120
      %v624 = vpop.permute.xlu0 %623
      %625 = vrot.lane.b32.xlu0 %v527, 120
      %v626 = vpop.permute.xlu0 %625
      %627 = vrot.lane.b32.xlu0 %v530, 120
      %v628 = vpop.permute.xlu0 %627
      %629 = vrot.lane.b32.xlu0 %v535, 120
      %v630 = vpop.permute.xlu0 %629
      %631 = vrot.lane.b32.xlu0 %v538, 120
      %v632 = vpop.permute.xlu0 %631
      %633 = vrot.lane.b32.xlu0 %v543, 120
      %v634 = vpop.permute.xlu0 %633
      %635 = vrot.lane.b32.xlu0 %v546, 120
      %v636 = vpop.permute.xlu0 %635
      %637 = vrot.lane.b32.xlu0 %v551, 120
      %v638 = vpop.permute.xlu0 %637
      %639 = vrot.lane.b32.xlu0 %v554, 120
      %v640 = vpop.permute.xlu0 %639
      %641 = vrot.lane.b32.xlu0 %v559, 120
      %v642 = vpop.permute.xlu0 %641
      %643 = vrot.lane.b32.xlu0 %v562, 120
      %v644 = vpop.permute.xlu0 %643
      %645 = vrot.lane.b32.xlu0 %v567, 120
      %v646 = vpop.permute.xlu0 %645
      %647 = vrot.lane.b32.xlu0 %v570, 120
      %v648 = vpop.permute.xlu0 %647
      %649 = vrot.lane.b32.xlu0 %v575, 120
      %v650 = vpop.permute.xlu0 %649
      %651 = vrot.lane.b32.xlu0 %v578, 120
      %v652 = vpop.permute.xlu0 %651
      %v653 = vadd.f32 %v447, %v590
      %v654 = vadd.f32 %v450, %v592
      %v655 = vadd.f32 %v455, %v594
      %v656 = vadd.f32 %v458, %v596
      %v657 = vadd.f32 %v463, %v598
      %v658 = vadd.f32 %v466, %v600
      %v659 = vadd.f32 %v471, %v602
      %v660 = vadd.f32 %v474, %v604
      %v661 = vadd.f32 %v479, %v606
      %v662 = vadd.f32 %v482, %v608
      %v663 = vadd.f32 %v487, %v610
      %v664 = vadd.f32 %v490, %v612
      %v665 = vadd.f32 %v495, %v614
      %v666 = vadd.f32 %v498, %v616
      %v667 = vadd.f32 %v503, %v618
      %v668 = vadd.f32 %v506, %v620
      %v669 = vadd.f32 %v511, %v622
      %v670 = vadd.f32 %v514, %v624
      %v671 = vadd.f32 %v519, %v626
      %v672 = vadd.f32 %v522, %v628
      %v673 = vadd.f32 %v527, %v630
      %v674 = vadd.f32 %v530, %v632
      %v675 = vadd.f32 %v535, %v634
      %v676 = vadd.f32 %v538, %v636
      %v677 = vadd.f32 %v543, %v638
      %v678 = vadd.f32 %v546, %v640
      %v679 = vadd.f32 %v551, %v642
      %v680 = vadd.f32 %v554, %v644
      %v681 = vadd.f32 %v559, %v646
      %v682 = vadd.f32 %v562, %v648
      %v683 = vadd.f32 %v567, %v650
      %v684 = vadd.f32 %v570, %v652
      %685 = vrot.lane.b32.xlu0 %v463, 112
      %v686 = vpop.permute.xlu0 %685
      %687 = vrot.lane.b32.xlu0 %v466, 112
      %v688 = vpop.permute.xlu0 %687
      %689 = vrot.lane.b32.xlu0 %v471, 112
      %v690 = vpop.permute.xlu0 %689
      %691 = vrot.lane.b32.xlu0 %v474, 112
      %v692 = vpop.permute.xlu0 %691
      %693 = vrot.lane.b32.xlu0 %v479, 112
      %v694 = vpop.permute.xlu0 %693
      %695 = vrot.lane.b32.xlu0 %v482, 112
      %v696 = vpop.permute.xlu0 %695
      %697 = vrot.lane.b32.xlu0 %v487, 112
      %v698 = vpop.permute.xlu0 %697
      %699 = vrot.lane.b32.xlu0 %v490, 112
      %v700 = vpop.permute.xlu0 %699
      %701 = vrot.lane.b32.xlu0 %v495, 112
      %v702 = vpop.permute.xlu0 %701
      %703 = vrot.lane.b32.xlu0 %v498, 112
      %v704 = vpop.permute.xlu0 %703
      %705 = vrot.lane.b32.xlu0 %v503, 112
      %v706 = vpop.permute.xlu0 %705
      %707 = vrot.lane.b32.xlu0 %v506, 112
      %v708 = vpop.permute.xlu0 %707
      %709 = vrot.lane.b32.xlu0 %v511, 112
      %v710 = vpop.permute.xlu0 %709
      %711 = vrot.lane.b32.xlu0 %v514, 112
      %v712 = vpop.permute.xlu0 %711
      %713 = vrot.lane.b32.xlu0 %v519, 112
      %v714 = vpop.permute.xlu0 %713
      %715 = vrot.lane.b32.xlu0 %v522, 112
      %v716 = vpop.permute.xlu0 %715
      %717 = vrot.lane.b32.xlu0 %v527, 112
      %v718 = vpop.permute.xlu0 %717
      %719 = vrot.lane.b32.xlu0 %v530, 112
      %v720 = vpop.permute.xlu0 %719
      %721 = vrot.lane.b32.xlu0 %v535, 112
      %v722 = vpop.permute.xlu0 %721
      %723 = vrot.lane.b32.xlu0 %v538, 112
      %v724 = vpop.permute.xlu0 %723
      %725 = vrot.lane.b32.xlu0 %v543, 112
      %v726 = vpop.permute.xlu0 %725
      %727 = vrot.lane.b32.xlu0 %v546, 112
      %v728 = vpop.permute.xlu0 %727
      %729 = vrot.lane.b32.xlu0 %v551, 112
      %v730 = vpop.permute.xlu0 %729
      %731 = vrot.lane.b32.xlu0 %v554, 112
      %v732 = vpop.permute.xlu0 %731
      %733 = vrot.lane.b32.xlu0 %v559, 112
      %v734 = vpop.permute.xlu0 %733
      %735 = vrot.lane.b32.xlu0 %v562, 112
      %v736 = vpop.permute.xlu0 %735
      %737 = vrot.lane.b32.xlu0 %v567, 112
      %v738 = vpop.permute.xlu0 %737
      %739 = vrot.lane.b32.xlu0 %v570, 112
      %v740 = vpop.permute.xlu0 %739
      %741 = vrot.lane.b32.xlu0 %v575, 112
      %v742 = vpop.permute.xlu0 %741
      %743 = vrot.lane.b32.xlu0 %v578, 112
      %v744 = vpop.permute.xlu0 %743
      %745 = vrot.lane.b32.xlu0 %v583, 112
      %v746 = vpop.permute.xlu0 %745
      %747 = vrot.lane.b32.xlu0 %v586, 112
      %v748 = vpop.permute.xlu0 %747
      %v749 = vadd.f32 %v653, %v686
      %v750 = vadd.f32 %v654, %v688
      %v751 = vadd.f32 %v655, %v690
      %v752 = vadd.f32 %v656, %v692
      %v753 = vadd.f32 %v657, %v694
      %v754 = vadd.f32 %v658, %v696
      %v755 = vadd.f32 %v659, %v698
      %v756 = vadd.f32 %v660, %v700
      %v757 = vadd.f32 %v661, %v702
      %v758 = vadd.f32 %v662, %v704
      %v759 = vadd.f32 %v663, %v706
      %v760 = vadd.f32 %v664, %v708
      %v761 = vadd.f32 %v665, %v710
      %v762 = vadd.f32 %v666, %v712
      %v763 = vadd.f32 %v667, %v714
      %v764 = vadd.f32 %v668, %v716
      %v765 = vadd.f32 %v669, %v718
      %v766 = vadd.f32 %v670, %v720
      %v767 = vadd.f32 %v671, %v722
      %v768 = vadd.f32 %v672, %v724
      %v769 = vadd.f32 %v673, %v726
      %v770 = vadd.f32 %v674, %v728
      %v771 = vadd.f32 %v675, %v730
      %v772 = vadd.f32 %v676, %v732
      %v773 = vadd.f32 %v677, %v734
      %v774 = vadd.f32 %v678, %v736
      %v775 = vadd.f32 %v679, %v738
      %v776 = vadd.f32 %v680, %v740
      %v777 = vadd.f32 %v681, %v742
      %v778 = vadd.f32 %v682, %v744
      %v779 = vadd.f32 %v683, %v746
      %v780 = vadd.f32 %v684, %v748
      %v781 = vpack.c.bf16 %v750, %v749
      %v782 = vpack.c.bf16 %v752, %v751
      %v783 = vpack.c.bf16 %v754, %v753
      %v784 = vpack.c.bf16 %v756, %v755
      %v785 = vpack.c.bf16 %v758, %v757
      %v786 = vpack.c.bf16 %v760, %v759
      %v787 = vpack.c.bf16 %v762, %v761
      %v788 = vpack.c.bf16 %v764, %v763
      %v789 = vpack.c.bf16 %v766, %v765
      %v790 = vpack.c.bf16 %v768, %v767
      %v791 = vpack.c.bf16 %v770, %v769
      %v792 = vpack.c.bf16 %v772, %v771
      %v793 = vpack.c.bf16 %v774, %v773
      %v794 = vpack.c.bf16 %v776, %v775
      %v795 = vpack.c.bf16 %v778, %v777
      %v796 = vpack.c.bf16 %v780, %v779
      %v813 = vunpack.c.l.b16 %v781
      %v814 = vunpack.c.h.b16 %v781
      %v815 = vunpack.c.l.b16 %v782
      %v816 = vunpack.c.h.b16 %v782
      %v817 = vunpack.c.l.b16 %v783
      %v818 = vunpack.c.h.b16 %v783
      %v819 = vunpack.c.l.b16 %v784
      %v820 = vunpack.c.h.b16 %v784
      %v821 = vunpack.c.l.b16 %v785
      %v822 = vunpack.c.h.b16 %v785
      %v823 = vunpack.c.l.b16 %v786
      %v824 = vunpack.c.h.b16 %v786
      %v825 = vunpack.c.l.b16 %v787
      %v826 = vunpack.c.h.b16 %v787
      %v827 = vunpack.c.l.b16 %v788
      %v828 = vunpack.c.h.b16 %v788
      %v829 = vunpack.c.l.b16 %v789
      %v830 = vunpack.c.h.b16 %v789
      %v831 = vunpack.c.l.b16 %v790
      %v832 = vunpack.c.h.b16 %v790
      %v833 = vunpack.c.l.b16 %v791
      %v834 = vunpack.c.h.b16 %v791
      %v835 = vunpack.c.l.b16 %v792
      %v836 = vunpack.c.h.b16 %v792
      %v837 = vunpack.c.l.b16 %v793
      %v838 = vunpack.c.h.b16 %v793
      %v839 = vunpack.c.l.b16 %v794
      %v840 = vunpack.c.h.b16 %v794
      %v841 = vunpack.c.l.b16 %v795
      %v842 = vunpack.c.h.b16 %v795
      %v843 = vunpack.c.l.b16 %v796
      %v844 = vunpack.c.h.b16 %v796
      %v845 = vpack.c.b16 %v813, %v813
      %v846 = vpack.c.b16 %v814, %v814
      %v847 = vpack.c.b16 %v815, %v815
      %v848 = vpack.c.b16 %v816, %v816
      %v849 = vpack.c.b16 %v817, %v817
      %v850 = vpack.c.b16 %v818, %v818
      %v851 = vpack.c.b16 %v819, %v819
      %v852 = vpack.c.b16 %v820, %v820
      %v853 = vpack.c.b16 %v821, %v821
      %v854 = vpack.c.b16 %v822, %v822
      %v855 = vpack.c.b16 %v823, %v823
      %v856 = vpack.c.b16 %v824, %v824
      %v857 = vpack.c.b16 %v825, %v825
      %v858 = vpack.c.b16 %v826, %v826
      %v859 = vpack.c.b16 %v827, %v827
      %v860 = vpack.c.b16 %v828, %v828
      %v861 = vpack.c.b16 %v829, %v829
      %v862 = vpack.c.b16 %v830, %v830
      %v863 = vpack.c.b16 %v831, %v831
      %v864 = vpack.c.b16 %v832, %v832
      %v865 = vpack.c.b16 %v833, %v833
      %v866 = vpack.c.b16 %v834, %v834
      %v867 = vpack.c.b16 %v835, %v835
      %v868 = vpack.c.b16 %v836, %v836
      %v869 = vpack.c.b16 %v837, %v837
      %v870 = vpack.c.b16 %v838, %v838
      %v871 = vpack.c.b16 %v839, %v839
      %v872 = vpack.c.b16 %v840, %v840
      %v873 = vpack.c.b16 %v841, %v841
      %v874 = vpack.c.b16 %v842, %v842
      %v875 = vpack.c.b16 %v843, %v843
      %v876 = vpack.c.b16 %v844, %v844
      %909 = vst [vmem:[%s205] sm:$0xf] %v845
      %910 = vst [vmem:[%s205 + $0x4] sm:$0xf] %v846
      %911 = vst [vmem:[%s205 + $0x8] sm:$0xf] %v847
      %912 = vst [vmem:[%s205 + $0xc] sm:$0xf] %v848
      %913 = vst [vmem:[%s205 + $0x10] sm:$0xf] %v849
      %914 = vst [vmem:[%s205 + $0x14] sm:$0xf] %v850
      %915 = vst [vmem:[%s205 + $0x18] sm:$0xf] %v851
      %916 = vst [vmem:[%s205 + $0x1c] sm:$0xf] %v852
      %917 = vst [vmem:[%s205 + $0x20] sm:$0xf] %v853
      %918 = vst [vmem:[%s205 + $0x24] sm:$0xf] %v854
      %919 = vst [vmem:[%s205 + $0x28] sm:$0xf] %v855
      %920 = vst [vmem:[%s205 + $0x2c] sm:$0xf] %v856
      %921 = vst [vmem:[%s205 + $0x30] sm:$0xf] %v857
      %922 = vst [vmem:[%s205 + $0x34] sm:$0xf] %v858
      %923 = vst [vmem:[%s205 + $0x38] sm:$0xf] %v859
      %924 = vst [vmem:[%s205 + $0x3c] sm:$0xf] %v860
      %925 = vst [vmem:[%s205 + $0x40] sm:$0xf] %v861
      %926 = vst [vmem:[%s205 + $0x44] sm:$0xf] %v862
      %927 = vst [vmem:[%s205 + $0x48] sm:$0xf] %v863
      %928 = vst [vmem:[%s205 + $0x4c] sm:$0xf] %v864
      %929 = vst [vmem:[%s205 + $0x50] sm:$0xf] %v865
      %930 = vst [vmem:[%s205 + $0x54] sm:$0xf] %v866
      %931 = vst [vmem:[%s205 + $0x58] sm:$0xf] %v867
      %932 = vst [vmem:[%s205 + $0x5c] sm:$0xf] %v868
      %933 = vst [vmem:[%s205 + $0x60] sm:$0xf] %v869
      %934 = vst [vmem:[%s205 + $0x64] sm:$0xf] %v870
      %935 = vst [vmem:[%s205 + $0x68] sm:$0xf] %v871
      %936 = vst [vmem:[%s205 + $0x6c] sm:$0xf] %v872
      %937 = vst [vmem:[%s205 + $0x70] sm:$0xf] %v873
      %938 = vst [vmem:[%s205 + $0x74] sm:$0xf] %v874
      %939 = vst [vmem:[%s205 + $0x78] sm:$0xf] %v875
      %940 = vst [vmem:[%s205 + $0x7c] sm:$0xf] %v876
      %v941 = vadd.f32 %v749, %v750
      %v942 = vadd.f32 %v941, %v751
      %v943 = vadd.f32 %v942, %v752
      %v944 = vadd.f32 %v943, %v753
      %v945 = vadd.f32 %v944, %v754
      %v946 = vadd.f32 %v945, %v755
      %v947 = vadd.f32 %v946, %v756
      %v948 = vadd.f32 %v947, %v757
      %v949 = vadd.f32 %v948, %v758
      %v950 = vadd.f32 %v949, %v759
      %v951 = vadd.f32 %v950, %v760
      %v952 = vadd.f32 %v951, %v761
      %v953 = vadd.f32 %v952, %v762
      %v954 = vadd.f32 %v953, %v763
      %v955 = vadd.f32 %v954, %v764
      %v956 = vadd.f32 %v955, %v765
      %v957 = vadd.f32 %v956, %v766
      %v958 = vadd.f32 %v957, %v767
      %v959 = vadd.f32 %v958, %v768
      %v960 = vadd.f32 %v959, %v769
      %v961 = vadd.f32 %v960, %v770
      %v962 = vadd.f32 %v961, %v771
      %v963 = vadd.f32 %v962, %v772
      %v964 = vadd.f32 %v963, %v773
      %v965 = vadd.f32 %v964, %v774
      %v966 = vadd.f32 %v965, %v775
      %v967 = vadd.f32 %v966, %v776
      %v968 = vadd.f32 %v967, %v777
      %v969 = vadd.f32 %v968, %v778
      %v970 = vadd.f32 %v969, %v779
      %v971 = vadd.f32 %v970, %v780
      %v972 = vrot.slane %v971, 4
      %v973 = vadd.f32 %v971, %v972
      %v974 = vrot.slane %v973, 2
      %v975 = vadd.f32 %v973, %v974
      %v976 = vrot.slane %v975, 1
      %v977 = vadd.f32 %v975, %v976
      %v978 = vmul.f32 %v749, %v749
      %v979 = vmul.f32 %v750, %v750
      %v980 = vmul.f32 %v751, %v751
      %v981 = vmul.f32 %v752, %v752
      %v982 = vmul.f32 %v753, %v753
      %v983 = vmul.f32 %v754, %v754
      %v984 = vmul.f32 %v755, %v755
      %v985 = vmul.f32 %v756, %v756
      %v986 = vmul.f32 %v757, %v757
      %v987 = vmul.f32 %v758, %v758
      %v988 = vmul.f32 %v759, %v759
      %v989 = vmul.f32 %v760, %v760
      %v990 = vmul.f32 %v761, %v761
      %v991 = vmul.f32 %v762, %v762
      %v992 = vmul.f32 %v763, %v763
      %v993 = vmul.f32 %v764, %v764
      %v994 = vmul.f32 %v765, %v765
      %v995 = vmul.f32 %v766, %v766
      %v996 = vmul.f32 %v767, %v767
      %v997 = vmul.f32 %v768, %v768
      %v998 = vmul.f32 %v769, %v769
      %v999 = vmul.f32 %v770, %v770
      %v1000 = vmul.f32 %v771, %v771
      %v1001 = vmul.f32 %v772, %v772
      %v1002 = vmul.f32 %v773, %v773
      %v1003 = vmul.f32 %v774, %v774
      %v1004 = vmul.f32 %v775, %v775
      %v1005 = vmul.f32 %v776, %v776
      %v1006 = vmul.f32 %v777, %v777
      %v1007 = vmul.f32 %v778, %v778
      %v1008 = vmul.f32 %v779, %v779
      %v1009 = vmul.f32 %v780, %v780
      %v1010 = vadd.f32 %v978, %v979
      %v1011 = vadd.f32 %v1010, %v980
      %v1012 = vadd.f32 %v1011, %v981
      %v1013 = vadd.f32 %v1012, %v982
      %v1014 = vadd.f32 %v1013, %v983
      %v1015 = vadd.f32 %v1014, %v984
      %v1016 = vadd.f32 %v1015, %v985
      %v1017 = vadd.f32 %v1016, %v986
      %v1018 = vadd.f32 %v1017, %v987
      %v1019 = vadd.f32 %v1018, %v988
      %v1020 = vadd.f32 %v1019, %v989
      %v1021 = vadd.f32 %v1020, %v990
      %v1022 = vadd.f32 %v1021, %v991
      %v1023 = vadd.f32 %v1022, %v992
      %v1024 = vadd.f32 %v1023, %v993
      %v1025 = vadd.f32 %v1024, %v994
      %v1026 = vadd.f32 %v1025, %v995
      %v1027 = vadd.f32 %v1026, %v996
      %v1028 = vadd.f32 %v1027, %v997
      %v1029 = vadd.f32 %v1028, %v998
      %v1030 = vadd.f32 %v1029, %v999
      %v1031 = vadd.f32 %v1030, %v1000
      %v1032 = vadd.f32 %v1031, %v1001
      %v1033 = vadd.f32 %v1032, %v1002
      %v1034 = vadd.f32 %v1033, %v1003
      %v1035 = vadd.f32 %v1034, %v1004
      %v1036 = vadd.f32 %v1035, %v1005
      %v1037 = vadd.f32 %v1036, %v1006
      %v1038 = vadd.f32 %v1037, %v1007
      %v1039 = vadd.f32 %v1038, %v1008
      %v1040 = vadd.f32 %v1039, %v1009
      %v1041 = vrot.slane %v1040, 4
      %v1042 = vadd.f32 %v1040, %v1041
      %v1043 = vrot.slane %v1042, 2
      %v1044 = vadd.f32 %v1042, %v1043
      %v1045 = vrot.slane %v1044, 1
      %v1046 = vadd.f32 %v1044, %v1045
      %v1047 = vlaneseq
      %v1048 = vshrl.u32 %v1047, 7
      %vm1049 = vcmp.eq.s32.totalorder %v1048, 0
      %v1050 = vsel %vm1049, %v977, %v1046
      %1051 = vst [vmem:[%s212] sm:$0x3] %v1050
      %s1052 = sadd.s32 %s19, %s20
      %s1053 = smul.u32 32, %s1052
      %p1054 = scmp.lt.s32.totalorder %s1053, 63
      %s1055 = scalar_select %p1054, %s1053, 63
      %s1056 = smul.addr %s1055, 4
      %s1057 = scalar_lea.vmem %s2, %s1056
      %s1058 = sadd.s32 %s19, %s20
      %p1059 = scmp.lt.s32.totalorder %s1058, 1
      %s1060 = scalar_select %p1059, %s1058, 1
      %s1061 = smul.addr %s1060, 2
      %s1062 = scalar_lea.vmem %s3, %s1061
      // Predicated region
      $region29: #{up_forward.3} parent=27 // pred_check
        %p1063 = pneg %p96
      $region30: #{up_forward.3} parent=27 // pred_check_branch
        %1065 = sbr.rel (%p1063) target = $region32
      $region31: #{up_forward.3} parent=27 // pred_region
        %s1066 = sadd.s32 %s19, %s20
        %s1067 = smul.u32 32, %s1066
      $region32: #{up_forward.3} parent=27 // pred_fallthru
        _
      // Predicated region
      $region33: #{up_forward.3} parent=27 // pred_check
        %p1068 = pneg %p124
      $region34: #{up_forward.3} parent=27 // pred_check_branch
        %1070 = sbr.rel (%p1068) target = $region36
      $region35: #{up_forward.3} parent=27 // pred_region
        %s1071 = sadd.s32 %s19, %s20
      $region36: #{up_forward.3} parent=27 // pred_fallthru
        _
    $region28: #{up_forward.3} parent=5 // pred_fallthru
      _
    %p1072 = scmp.le.s32.totalorder 2, %s10
    // Predicated region
    $region37: #{up_forward.3} parent=5 // pred_check
      %p1073 = pneg %p1072
    $region38: #{up_forward.3} parent=5 // pred_check_branch
      %1075 = sbr.rel (%p1073) target = $region40
    $region39: #{up_forward.3} parent=5 // pred_region
      %s1076 = ssub.s32 %s10, 2
      // Predicated region
      $region41: #{up_forward.3} parent=39 // pred_check
        %p1077 = pneg %p102
      $region42: #{up_forward.3} parent=39 // pred_check_branch
        %1079 = sbr.rel (%p1077) target = $region44
      $region43: #{up_forward.3} parent=39 // pred_region
        %s1080 = sadd.s32 %s21, %s22
        %s1081 = smul.u32 32, %s1080
        %p1082 = scmp.lt.s32.totalorder %s1081, 63
        %s1083 = scalar_select %p1082, %s1081, 63
        %s1084 = smul.addr %s1083, 4
        %s1085 = scalar_lea.vmem %s2, %s1084
      $region44: #{up_forward.3} parent=39 // pred_fallthru
        _
      // Predicated region
      $region45: #{up_forward.3} parent=39 // pred_check
        %p1086 = pneg %p130
      $region46: #{up_forward.3} parent=39 // pred_check_branch
        %1088 = sbr.rel (%p1086) target = $region48
      $region47: #{up_forward.3} parent=39 // pred_region
        %s1089 = sadd.s32 %s21, %s22
        %p1090 = scmp.lt.s32.totalorder %s1089, 1
        %s1091 = scalar_select %p1090, %s1089, 1
        %s1092 = smul.addr %s1091, 2
        %s1093 = scalar_lea.vmem %s3, %s1092
      $region48: #{up_forward.3} parent=39 // pred_fallthru
        _
    $region40: #{up_forward.3} parent=5 // pred_fallthru
      _
  $region6: #{up_forward.3} parent=0 // loop_footer
    %s14 = sadd.s32 1, %s10
  $region7: #{up_forward.3} parent=0 // loop_footer_branch
    %9 = sbr.rel target = $region3
  $region8: #{up_forward.3} parent=0 // loop_exit
    _

</llo_original>
